<compile_context>
chip_gen: v6e
topology: v6e:2x2x1
jax: 0.10.0
libtpu: 0.0.40
codegen_flags: <defaults>
</compile_context>

<pallas_src>
import functools

import jax
import jax.numpy as jnp
from jax import lax
from jax.experimental import pallas as pl
from jax.experimental.pallas import tpu as pltpu


_VMEM_LIMIT = 32 * 1024 * 1024  # explicit scoped-VMEM budget; safe on v5e / v6e / v7x


def _choose_tile(dim, target, align):
    """Largest multiple of `align` that divides `dim` and is <= `target`.

    Falls back to the full dimension (single block) when no such tile exists,
    which also covers the small-shape test case (full-dim blocks are always legal).
    """
    if dim <= target:
        return dim
    t = (target // align) * align
    while t >= align:
        if dim % t == 0:
            return t
        t -= align
    return dim


# ----------------------------------------------------------------------------
# Tiled projection matmul kernels (QKV projection / output projection)
# ----------------------------------------------------------------------------
def _matmul_kernel(x_ref, w_ref, o_ref, acc_ref):
    @pl.when(pl.program_id(2) == 0)
    def _init():
        acc_ref[...] = jnp.zeros_like(acc_ref)

    acc_ref[...] += jnp.dot(x_ref[...], w_ref[...],
                            preferred_element_type=jnp.float32)

    @pl.when(pl.program_id(2) == pl.num_programs(2) - 1)
    def _finalize():
        o_ref[...] = acc_ref[...].astype(o_ref.dtype)


def _matmul_bias_kernel(x_ref, w_ref, b_ref, o_ref, acc_ref):
    @pl.when(pl.program_id(2) == 0)
    def _init():
        acc_ref[...] = jnp.zeros_like(acc_ref)

    acc_ref[...] += jnp.dot(x_ref[...], w_ref[...],
                            preferred_element_type=jnp.float32)

    @pl.when(pl.program_id(2) == pl.num_programs(2) - 1)
    def _finalize():
        o_ref[...] = (acc_ref[...] + b_ref[...].astype(jnp.float32)).astype(o_ref.dtype)


def pallas_linear(x2d, w, b=None, *, tm=256, tn=256, tk=512):
    """y = x2d @ w (+ b), tiled & software-pipelined on the MXU.

    Tile targets: 256 on M/N (MXU-native on v6e/v7x, 2x native on v5e), 512 on K.
    Tiles shrink to the full dimension for small problems (the test case).
    """
    M, K = x2d.shape
    _, Nf = w.shape
    tm = _choose_tile(M, tm, 8)
    tn = _choose_tile(Nf, tn, 128)
    tk = _choose_tile(K, tk, 128)
    grid = (M // tm, Nf // tn, K // tk)                 # K (reduction) axis last

    x_spec = pl.BlockSpec((tm, tk), lambda i, j, k: (i, k))
    w_spec = pl.BlockSpec((tk, tn), lambda i, j, k: (k, j))
    o_spec = pl.BlockSpec((tm, tn), lambda i, j, k: (i, j))
    scratch = [pltpu.VMEM((tm, tn), jnp.float32)]
    params = pltpu.CompilerParams(
        dimension_semantics=("parallel", "parallel", "arbitrary"),
        vmem_limit_bytes=_VMEM_LIMIT,
    )

    if b is None:
        return pl.pallas_call(
            _matmul_kernel,
            out_shape=jax.ShapeDtypeStruct((M, Nf), x2d.dtype),
            grid=grid,
            in_specs=[x_spec, w_spec],
            out_specs=o_spec,
            scratch_shapes=scratch,
            compiler_params=params,
        )(x2d, w)

    b2d = b.reshape(1, Nf)
    b_spec = pl.BlockSpec((1, tn), lambda i, j, k: (0, j))
    return pl.pallas_call(
        _matmul_bias_kernel,
        out_shape=jax.ShapeDtypeStruct((M, Nf), x2d.dtype),
        grid=grid,
        in_specs=[x_spec, w_spec, b_spec],
        out_specs=o_spec,
        scratch_shapes=scratch,
        compiler_params=params,
    )(x2d, w, b2d)


# ----------------------------------------------------------------------------
# Attention kernel: one batch per grid step, all heads handled inside the step.
# ----------------------------------------------------------------------------
def _attn_kernel(qkv_ref, o_ref, w_ref, *, num_heads, head_dim, scale):
    C = num_heads * head_dim
    qkv = qkv_ref[0]                        # (N, 3C), input dtype
    q_all = qkv[:, :C] * scale              # scale folded into q: O(N*C), not O(N^2)
    k_all = qkv[:, C:2 * C]
    v_all = qkv[:, 2 * C:3 * C]

    for h in range(num_heads):              # unrolled at trace time: no grid overhead
        lo, hi = h * head_dim, (h + 1) * head_dim
        qh = q_all[:, lo:hi]
        kh = k_all[:, lo:hi]
        vh = v_all[:, lo:hi]

        # q @ k^T without materializing a transpose (MXU consumes k directly).
        s = lax.dot_general(qh, kh, (((1,), (1,)), ((), ())),
                            preferred_element_type=jnp.float32)        # (N, N) f32
        s = s - jnp.max(s, axis=-1, keepdims=True)
        p = jnp.exp(s)
        p = p * pl.reciprocal(jnp.sum(p, axis=-1, keepdims=True), approx=True)

        w_ref[0, h] = p.astype(w_ref.dtype)                            # softmax weights
        o_h = jnp.dot(p.astype(vh.dtype), vh, preferred_element_type=jnp.float32)
        o_ref[0, :, lo:hi] = o_h.astype(o_ref.dtype)   # heads merged in-place -> (N, C)


def attention_forward(x, w_qkv, w_proj, b_proj, num_heads):
    """Equivalent to Attention.forward (with_qkv=True, dropout=0 / eval mode).

    Returns (out, weight): out (B, N, C), weight (B, H, N, N).
    MXU operands use x.dtype (pass bf16 inputs for peak throughput); accumulation
    and all softmax math are f32.
    """
    B, N, C = x.shape
    head_dim = C // num_heads
    scale = head_dim ** (-0.5)

    # QKV projection; result kept as (B, N, 3C) so the head split happens inside the
    # attention kernel's BlockSpec/DMA (no XLA reshape/transpose HBM round-trip).
    qkv = pallas_linear(x.reshape(B * N, C), w_qkv).reshape(B, N, 3 * C)

    # TODO(synk): for large N, a flash-style (online-softmax, kv-tiled) variant without
    # the full (B, H, N, N) weight output would keep VMEM/HBM traffic O(N*tile); the
    # module's API requires returning the full softmax weights, so they are emitted.
    out, weight = pl.pallas_call(
        functools.partial(_attn_kernel, num_heads=num_heads,
                          head_dim=head_dim, scale=scale),
        out_shape=(
            jax.ShapeDtypeStruct((B, N, C), x.dtype),
            jax.ShapeDtypeStruct((B, num_heads, N, N), x.dtype),
        ),
        grid=(B,),
        in_specs=[pl.BlockSpec((1, N, 3 * C), lambda b: (b, 0, 0))],
        out_specs=(
            pl.BlockSpec((1, N, C), lambda b: (b, 0, 0)),              # lane-dense out
            pl.BlockSpec((1, num_heads, N, N), lambda b: (b, 0, 0, 0)),
        ),
        compiler_params=pltpu.CompilerParams(
            dimension_semantics=("parallel",),
            vmem_limit_bytes=_VMEM_LIMIT,
        ),
    )(qkv)

    # Output projection (heads were already merged lane-densely by the attention kernel).
    out = pallas_linear(out.reshape(B * N, C), w_proj, b_proj).reshape(B, N, C)
    return out, weight


# ----------------------------------------------------------------------------
# Pure-JAX reference (for verification)
# ----------------------------------------------------------------------------
def attention_reference(x, w_qkv, w_proj, b_proj, num_heads):
    B, N, C = x.shape
    D = C // num_heads
    scale = D ** (-0.5)
    qkv = (x.reshape(B * N, C) @ w_qkv).reshape(B, N, 3, num_heads, D)
    qkv = qkv.transpose(2, 0, 3, 1, 4)
    q, k, v = qkv[0], qkv[1], qkv[2]
    attn = jnp.einsum("bhnd,bhmd->bhnm", q, k) * scale
    attn = jax.nn.softmax(attn, axis=-1)
    out = jnp.einsum("bhnm,bhmd->bhnd", attn, v)
    out = out.transpose(0, 2, 1, 3).reshape(B, N, C)
    out = out @ w_proj + b_proj
    return out, attn


# ----------------------------------------------------------------------------
# Main
# ----------------------------------------------------------------------------
if __name__ == "__main__":
    B, N, C = 2, 8, 32
    num_heads = 8                       # head_dim = 4, scale = 0.5

    key = jax.random.PRNGKey(0)
    kx, kqkv, kproj, kbias = jax.random.split(key, 4)

    x = jax.random.normal(kx, (B, N, C), dtype=jnp.float32)
    # Deterministic synthetic parameters (nn.Linear(dim, dim*3, bias=False),
    # nn.Linear(dim, dim)); stored pre-transposed so y = x @ W.
    w_qkv = jax.random.normal(kqkv, (C, 3 * C), dtype=jnp.float32) * 0.05
    w_proj = jax.random.normal(kproj, (C, C), dtype=jnp.float32) * 0.05
    b_proj = jax.random.normal(kbias, (C,), dtype=jnp.float32) * 0.05

    fwd = jax.jit(functools.partial(attention_forward, num_heads=num_heads))

    # f32 path (matches the PyTorch module's numerics; approx reciprocal in softmax).
    out, weight = fwd(x, w_qkv, w_proj, b_proj)
    jax.block_until_ready((out, weight))

    ref_out, ref_w = attention_reference(x, w_qkv, w_proj, b_proj, num_heads)
    assert out.shape == (B, N, C) and weight.shape == (B, num_heads, N, N)
    assert jnp.allclose(out, ref_out, atol=5e-3, rtol=5e-3)
    assert jnp.allclose(weight, ref_w, atol=5e-3, rtol=5e-3)

    # bf16 perf path: MXU fed bf16 operands with f32 accumulation / f32 softmax.
    out_bf, w_bf = fwd(x.astype(jnp.bfloat16), w_qkv.astype(jnp.bfloat16),
                       w_proj.astype(jnp.bfloat16), b_proj.astype(jnp.bfloat16))
    jax.block_until_ready((out_bf, w_bf))
    assert jnp.allclose(out_bf.astype(jnp.float32), ref_out, atol=5e-2, rtol=5e-2)
    assert jnp.allclose(w_bf.astype(jnp.float32), ref_w, atol=5e-2, rtol=5e-2)

    print("KERNEL_OK")
</pallas_src>

<mosaic_0001>
module attributes {stable_mosaic.version = 11 : i64} {
  func.func @_matmul_bias_kernel(%arg0: i32, %arg1: i32, %arg2: i32, %arg3: memref<16x32xf32, #tpu.memory_space<vmem>>, %arg4: memref<32x32xf32, #tpu.memory_space<vmem>>, %arg5: memref<1x32xf32, #tpu.memory_space<vmem>>, %arg6: memref<16x32xf32, #tpu.memory_space<vmem>>, %arg7: memref<16x32xf32, #tpu.memory_space<vmem>>) attributes {dimension_semantics = [#tpu.dimension_semantics<parallel>, #tpu.dimension_semantics<parallel>, #tpu.dimension_semantics<arbitrary>], iteration_bounds = array<i64: 1, 1, 1>, scalar_prefetch = 0 : i64, scratch_operands = 1 : i64, tpu.core_type = #tpu.core_type<tc>, window_params = [{transform_indices = @transform_0, window_bounds = array<i64: 16, 32>}, {transform_indices = @transform_1, window_bounds = array<i64: 32, 32>}, {transform_indices = @transform_2, window_bounds = array<i64: 1, 32>}, {transform_indices = @transform_3, window_bounds = array<i64: 16, 32>}]} {
    %c0_i32 = arith.constant 0 : i32
    %0 = arith.cmpi eq, %arg2, %c0_i32 : i32
    %1 = arith.extui %0 : i1 to i32
    %c0_i32_0 = arith.constant 0 : i32
    %2 = arith.cmpi ne, %1, %c0_i32_0 : i32
    scf.if %2 {
      %cst_10 = arith.constant 0.000000e+00 : f32
      %12 = vector.broadcast %cst_10 : f32 to vector<16x32xf32>
      %c0_11 = arith.constant 0 : index
      %c0_12 = arith.constant 0 : index
      %13 = vector.load %arg7[%c0_11, %c0_12] : memref<16x32xf32, #tpu.memory_space<vmem>>, vector<16x32xf32>
      tpu.vector_store %arg7[%c0_11, %c0_12], %12 {strides = array<i32>} : memref<16x32xf32, #tpu.memory_space<vmem>>, vector<16x32xf32>,
    } else {
    }
    %c0 = arith.constant 0 : index
    %c0_1 = arith.constant 0 : index
    %3 = vector.load %arg7[%c0, %c0_1] : memref<16x32xf32, #tpu.memory_space<vmem>>, vector<16x32xf32>
    %c0_2 = arith.constant 0 : index
    %c0_3 = arith.constant 0 : index
    %4 = vector.load %arg3[%c0_2, %c0_3] : memref<16x32xf32, #tpu.memory_space<vmem>>, vector<16x32xf32>
    %c0_4 = arith.constant 0 : index
    %c0_5 = arith.constant 0 : index
    %5 = vector.load %arg4[%c0_4, %c0_5] : memref<32x32xf32, #tpu.memory_space<vmem>>, vector<32x32xf32>
    %cst = arith.constant dense<0.000000e+00> : vector<16x32xf32>
    %6 = tpu.matmul %4, %5, %cst {dimension_numbers = #tpu.dot_dimension_numbers<[1], [0], [0], [1], [0, 0, 1, 1], [], []>} : vector<16x32xf32>, vector<32x32xf32>, vector<16x32xf32> -> vector<16x32xf32>
    %7 = arith.addf %3, %6 : vector<16x32xf32>
    %c0_6 = arith.constant 0 : index
    %c0_7 = arith.constant 0 : index
    %8 = vector.load %arg7[%c0_6, %c0_7] : memref<16x32xf32, #tpu.memory_space<vmem>>, vector<16x32xf32>
    tpu.vector_store %arg7[%c0_6, %c0_7], %7 {strides = array<i32>} : memref<16x32xf32, #tpu.memory_space<vmem>>, vector<16x32xf32>,
    %c0_i32_8 = arith.constant 0 : i32
    %9 = arith.cmpi eq, %arg2, %c0_i32_8 : i32
    %10 = arith.extui %9 : i1 to i32
    %c0_i32_9 = arith.constant 0 : i32
    %11 = arith.cmpi ne, %10, %c0_i32_9 : i32
    scf.if %11 {
      %c0_10 = arith.constant 0 : index
      %c0_11 = arith.constant 0 : index
      %12 = vector.load %arg7[%c0_10, %c0_11] : memref<16x32xf32, #tpu.memory_space<vmem>>, vector<16x32xf32>
      %c0_12 = arith.constant 0 : index
      %c0_13 = arith.constant 0 : index
      %13 = vector.load %arg5[%c0_12, %c0_13] : memref<1x32xf32, #tpu.memory_space<vmem>>, vector<1x32xf32>
      %14 = vector.broadcast %13 : vector<1x32xf32> to vector<16x32xf32>
      %15 = arith.addf %12, %14 : vector<16x32xf32>
      %c0_14 = arith.constant 0 : index
      %c0_15 = arith.constant 0 : index
      %16 = vector.load %arg6[%c0_14, %c0_15] : memref<16x32xf32, #tpu.memory_space<vmem>>, vector<16x32xf32>
      tpu.vector_store %arg6[%c0_14, %c0_15], %15 {strides = array<i32>} : memref<16x32xf32, #tpu.memory_space<vmem>>, vector<16x32xf32>,
    } else {
    }
    return
  }
  func.func @transform_0(%arg0: i32, %arg1: i32, %arg2: i32) -> (i32, i32) {
    %c0_i32 = arith.constant 0 : i32
    return %arg0, %arg2 : i32, i32
  }
  func.func @transform_1(%arg0: i32, %arg1: i32, %arg2: i32) -> (i32, i32) {
    %c0_i32 = arith.constant 0 : i32
    return %arg2, %arg1 : i32, i32
  }
  func.func @transform_2(%arg0: i32, %arg1: i32, %arg2: i32) -> (i32, i32) {
    %c0_i32 = arith.constant 0 : i32
    %c0_i32_0 = arith.constant 0 : i32
    return %c0_i32, %arg1 : i32, i32
  }
  func.func @transform_3(%arg0: i32, %arg1: i32, %arg2: i32) -> (i32, i32) {
    %c0_i32 = arith.constant 0 : i32
    return %arg0, %arg1 : i32, i32
  }
}

module attributes {stable_mosaic.version = 11 : i64} {
  func.func @_matmul_kernel(%arg0: i32, %arg1: i32, %arg2: i32, %arg3: memref<16x32xf32, #tpu.memory_space<vmem>>, %arg4: memref<32x96xf32, #tpu.memory_space<vmem>>, %arg5: memref<16x96xf32, #tpu.memory_space<vmem>>, %arg6: memref<16x96xf32, #tpu.memory_space<vmem>>) attributes {dimension_semantics = [#tpu.dimension_semantics<parallel>, #tpu.dimension_semantics<parallel>, #tpu.dimension_semantics<arbitrary>], iteration_bounds = array<i64: 1, 1, 1>, scalar_prefetch = 0 : i64, scratch_operands = 1 : i64, tpu.core_type = #tpu.core_type<tc>, window_params = [{transform_indices = @transform_0, window_bounds = array<i64: 16, 32>}, {transform_indices = @transform_1, window_bounds = array<i64: 32, 96>}, {transform_indices = @transform_2, window_bounds = array<i64: 16, 96>}]} {
    %c0_i32 = arith.constant 0 : i32
    %0 = arith.cmpi eq, %arg2, %c0_i32 : i32
    %1 = arith.extui %0 : i1 to i32
    %c0_i32_0 = arith.constant 0 : i32
    %2 = arith.cmpi ne, %1, %c0_i32_0 : i32
    scf.if %2 {
      %cst_10 = arith.constant 0.000000e+00 : f32
      %12 = vector.broadcast %cst_10 : f32 to vector<16x96xf32>
      %c0_11 = arith.constant 0 : index
      %c0_12 = arith.constant 0 : index
      %13 = vector.load %arg6[%c0_11, %c0_12] : memref<16x96xf32, #tpu.memory_space<vmem>>, vector<16x96xf32>
      tpu.vector_store %arg6[%c0_11, %c0_12], %12 {strides = array<i32>} : memref<16x96xf32, #tpu.memory_space<vmem>>, vector<16x96xf32>,
    } else {
    }
    %c0 = arith.constant 0 : index
    %c0_1 = arith.constant 0 : index
    %3 = vector.load %arg6[%c0, %c0_1] : memref<16x96xf32, #tpu.memory_space<vmem>>, vector<16x96xf32>
    %c0_2 = arith.constant 0 : index
    %c0_3 = arith.constant 0 : index
    %4 = vector.load %arg3[%c0_2, %c0_3] : memref<16x32xf32, #tpu.memory_space<vmem>>, vector<16x32xf32>
    %c0_4 = arith.constant 0 : index
    %c0_5 = arith.constant 0 : index
    %5 = vector.load %arg4[%c0_4, %c0_5] : memref<32x96xf32, #tpu.memory_space<vmem>>, vector<32x96xf32>
    %cst = arith.constant dense<0.000000e+00> : vector<16x96xf32>
    %6 = tpu.matmul %4, %5, %cst {dimension_numbers = #tpu.dot_dimension_numbers<[1], [0], [0], [1], [0, 0, 1, 1], [], []>} : vector<16x32xf32>, vector<32x96xf32>, vector<16x96xf32> -> vector<16x96xf32>
    %7 = arith.addf %3, %6 : vector<16x96xf32>
    %c0_6 = arith.constant 0 : index
    %c0_7 = arith.constant 0 : index
    %8 = vector.load %arg6[%c0_6, %c0_7] : memref<16x96xf32, #tpu.memory_space<vmem>>, vector<16x96xf32>
    tpu.vector_store %arg6[%c0_6, %c0_7], %7 {strides = array<i32>} : memref<16x96xf32, #tpu.memory_space<vmem>>, vector<16x96xf32>,
    %c0_i32_8 = arith.constant 0 : i32
    %9 = arith.cmpi eq, %arg2, %c0_i32_8 : i32
    %10 = arith.extui %9 : i1 to i32
    %c0_i32_9 = arith.constant 0 : i32
    %11 = arith.cmpi ne, %10, %c0_i32_9 : i32
    scf.if %11 {
      %c0_10 = arith.constant 0 : index
      %c0_11 = arith.constant 0 : index
      %12 = vector.load %arg6[%c0_10, %c0_11] : memref<16x96xf32, #tpu.memory_space<vmem>>, vector<16x96xf32>
      %c0_12 = arith.constant 0 : index
      %c0_13 = arith.constant 0 : index
      %13 = vector.load %arg5[%c0_12, %c0_13] : memref<16x96xf32, #tpu.memory_space<vmem>>, vector<16x96xf32>
      tpu.vector_store %arg5[%c0_12, %c0_13], %12 {strides = array<i32>} : memref<16x96xf32, #tpu.memory_space<vmem>>, vector<16x96xf32>,
    } else {
    }
    return
  }
  func.func @transform_0(%arg0: i32, %arg1: i32, %arg2: i32) -> (i32, i32) {
    %c0_i32 = arith.constant 0 : i32
    return %arg0, %arg2 : i32, i32
  }
  func.func @transform_1(%arg0: i32, %arg1: i32, %arg2: i32) -> (i32, i32) {
    %c0_i32 = arith.constant 0 : i32
    return %arg2, %arg1 : i32, i32
  }
  func.func @transform_2(%arg0: i32, %arg1: i32, %arg2: i32) -> (i32, i32) {
    %c0_i32 = arith.constant 0 : i32
    return %arg0, %arg1 : i32, i32
  }
}

module attributes {stable_mosaic.version = 11 : i64} {
  func.func @_attn_kernel(%arg0: i32, %arg1: memref<1x8x96xf32, #tpu.memory_space<vmem>>, %arg2: memref<1x8x32xf32, #tpu.memory_space<vmem>>, %arg3: memref<1x8x8x8xf32, #tpu.memory_space<vmem>>) attributes {dimension_semantics = [#tpu.dimension_semantics<parallel>], iteration_bounds = array<i64: 2>, scalar_prefetch = 0 : i64, scratch_operands = 0 : i64, tpu.core_type = #tpu.core_type<tc>, window_params = [{transform_indices = @transform_0, window_bounds = array<i64: 1, 8, 96>}, {transform_indices = @transform_1, window_bounds = array<i64: 1, 8, 32>}, {transform_indices = @transform_2, window_bounds = array<i64: 1, 8, 8, 8>}]} {
    %c0 = arith.constant 0 : index
    %c0_0 = arith.constant 0 : index
    %c0_1 = arith.constant 0 : index
    %0 = vector.load %arg1[%c0, %c0_0, %c0_1] : memref<1x8x96xf32, #tpu.memory_space<vmem>>, vector<1x8x96xf32>
    %1 = vector.shape_cast %0 : vector<1x8x96xf32> to vector<8x96xf32>
    %2 = vector.extract_strided_slice %1 {offsets = [0, 0], sizes = [8, 32], strides = [1, 1]} : vector<8x96xf32> to vector<8x32xf32>
    %cst = arith.constant 5.000000e-01 : f32
    %3 = vector.broadcast %cst : f32 to vector<8x32xf32>
    %4 = arith.mulf %2, %3 : vector<8x32xf32>
    %5 = vector.extract_strided_slice %1 {offsets = [0, 32], sizes = [8, 32], strides = [1, 1]} : vector<8x96xf32> to vector<8x32xf32>
    %6 = vector.extract_strided_slice %1 {offsets = [0, 64], sizes = [8, 32], strides = [1, 1]} : vector<8x96xf32> to vector<8x32xf32>
    %7 = vector.extract_strided_slice %4 {offsets = [0, 0], sizes = [8, 4], strides = [1, 1]} : vector<8x32xf32> to vector<8x4xf32>
    %8 = vector.extract_strided_slice %5 {offsets = [0, 0], sizes = [8, 4], strides = [1, 1]} : vector<8x32xf32> to vector<8x4xf32>
    %9 = vector.extract_strided_slice %6 {offsets = [0, 0], sizes = [8, 4], strides = [1, 1]} : vector<8x32xf32> to vector<8x4xf32>
    %cst_2 = arith.constant dense<0.000000e+00> : vector<8x8xf32>
    %10 = tpu.matmul %7, %8, %cst_2 {dimension_numbers = #tpu.dot_dimension_numbers<[1], [1], [0], [0], [0, 0, 1, 0], [], []>} : vector<8x4xf32>, vector<8x4xf32>, vector<8x8xf32> -> vector<8x8xf32>
    %cst_3 = arith.constant dense<0xFF800000> : vector<8xf32>
    %11 = vector.multi_reduction <maximumf>, %10, %cst_3 [1] : vector<8x8xf32> to vector<8xf32>
    %12 = vector.shape_cast %11 : vector<8xf32> to vector<8x1xf32>
    %13 = vector.broadcast %12 : vector<8x1xf32> to vector<8x8xf32>
    %14 = arith.subf %10, %13 : vector<8x8xf32>
    %15 = math.exp %14 : vector<8x8xf32>
    %cst_4 = arith.constant dense<0.000000e+00> : vector<8xf32>
    %16 = vector.multi_reduction <add>, %15, %cst_4 [1] : vector<8x8xf32> to vector<8xf32>
    %17 = vector.shape_cast %16 : vector<8xf32> to vector<8x1xf32>
    %18 = tpu.reciprocal %17 {approx = true} : vector<8x1xf32> -> vector<8x1xf32>
    %19 = vector.broadcast %18 : vector<8x1xf32> to vector<8x8xf32>
    %20 = arith.mulf %15, %19 : vector<8x8xf32>
    %c0_5 = arith.constant 0 : index
    %c0_6 = arith.constant 0 : index
    %c0_7 = arith.constant 0 : index
    %c0_8 = arith.constant 0 : index
    %21 = vector.load %arg3[%c0_5, %c0_6, %c0_7, %c0_8] : memref<1x8x8x8xf32, #tpu.memory_space<vmem>>, vector<1x1x8x8xf32>
    %22 = vector.shape_cast %21 : vector<1x1x8x8xf32> to vector<8x8xf32>
    %23 = vector.shape_cast %20 : vector<8x8xf32> to vector<1x1x8x8xf32>
    tpu.vector_store %arg3[%c0_5, %c0_6, %c0_7, %c0_8], %23 {strides = array<i32>} : memref<1x8x8x8xf32, #tpu.memory_space<vmem>>, vector<1x1x8x8xf32>,
    %cst_9 = arith.constant dense<0.000000e+00> : vector<8x4xf32>
    %24 = tpu.matmul %20, %9, %cst_9 {dimension_numbers = #tpu.dot_dimension_numbers<[1], [0], [0], [1], [0, 0, 1, 1], [], []>} : vector<8x8xf32>, vector<8x4xf32>, vector<8x4xf32> -> vector<8x4xf32>
    %c0_10 = arith.constant 0 : index
    %c0_11 = arith.constant 0 : index
    %c0_12 = arith.constant 0 : index
    %25 = vector.load %arg2[%c0_10, %c0_11, %c0_12] : memref<1x8x32xf32, #tpu.memory_space<vmem>>, vector<1x8x4xf32>
    %26 = vector.shape_cast %25 : vector<1x8x4xf32> to vector<8x4xf32>
    %27 = vector.shape_cast %24 : vector<8x4xf32> to vector<1x8x4xf32>
    tpu.vector_store %arg2[%c0_10, %c0_11, %c0_12], %27 {strides = array<i32>} : memref<1x8x32xf32, #tpu.memory_space<vmem>>, vector<1x8x4xf32>,
    %28 = vector.extract_strided_slice %4 {offsets = [0, 4], sizes = [8, 4], strides = [1, 1]} : vector<8x32xf32> to vector<8x4xf32>
    %29 = vector.extract_strided_slice %5 {offsets = [0, 4], sizes = [8, 4], strides = [1, 1]} : vector<8x32xf32> to vector<8x4xf32>
    %30 = vector.extract_strided_slice %6 {offsets = [0, 4], sizes = [8, 4], strides = [1, 1]} : vector<8x32xf32> to vector<8x4xf32>
    %cst_13 = arith.constant dense<0.000000e+00> : vector<8x8xf32>
    %31 = tpu.matmul %28, %29, %cst_13 {dimension_numbers = #tpu.dot_dimension_numbers<[1], [1], [0], [0], [0, 0, 1, 0], [], []>} : vector<8x4xf32>, vector<8x4xf32>, vector<8x8xf32> -> vector<8x8xf32>
    %cst_14 = arith.constant dense<0xFF800000> : vector<8xf32>
    %32 = vector.multi_reduction <maximumf>, %31, %cst_14 [1] : vector<8x8xf32> to vector<8xf32>
    %33 = vector.shape_cast %32 : vector<8xf32> to vector<8x1xf32>
    %34 = vector.broadcast %33 : vector<8x1xf32> to vector<8x8xf32>
    %35 = arith.subf %31, %34 : vector<8x8xf32>
    %36 = math.exp %35 : vector<8x8xf32>
    %cst_15 = arith.constant dense<0.000000e+00> : vector<8xf32>
    %37 = vector.multi_reduction <add>, %36, %cst_15 [1] : vector<8x8xf32> to vector<8xf32>
    %38 = vector.shape_cast %37 : vector<8xf32> to vector<8x1xf32>
    %39 = tpu.reciprocal %38 {approx = true} : vector<8x1xf32> -> vector<8x1xf32>
    %40 = vector.broadcast %39 : vector<8x1xf32> to vector<8x8xf32>
    %41 = arith.mulf %36, %40 : vector<8x8xf32>
    %c0_16 = arith.constant 0 : index
    %c1 = arith.constant 1 : index
    %c0_17 = arith.constant 0 : index
    %c0_18 = arith.constant 0 : index
    %42 = vector.load %arg3[%c0_16, %c1, %c0_17, %c0_18] : memref<1x8x8x8xf32, #tpu.memory_space<vmem>>, vector<1x1x8x8xf32>
    %43 = vector.shape_cast %42 : vector<1x1x8x8xf32> to vector<8x8xf32>
    %44 = vector.shape_cast %41 : vector<8x8xf32> to vector<1x1x8x8xf32>
    tpu.vector_store %arg3[%c0_16, %c1, %c0_17, %c0_18], %44 {strides = array<i32>} : memref<1x8x8x8xf32, #tpu.memory_space<vmem>>, vector<1x1x8x8xf32>,
    %cst_19 = arith.constant dense<0.000000e+00> : vector<8x4xf32>
    %45 = tpu.matmul %41, %30, %cst_19 {dimension_numbers = #tpu.dot_dimension_numbers<[1], [0], [0], [1], [0, 0, 1, 1], [], []>} : vector<8x8xf32>, vector<8x4xf32>, vector<8x4xf32> -> vector<8x4xf32>
    %c0_20 = arith.constant 0 : index
    %c0_21 = arith.constant 0 : index
    %c4 = arith.constant 4 : index
    %46 = vector.load %arg2[%c0_20, %c0_21, %c4] : memref<1x8x32xf32, #tpu.memory_space<vmem>>, vector<1x8x4xf32>
    %47 = vector.shape_cast %46 : vector<1x8x4xf32> to vector<8x4xf32>
    %48 = vector.shape_cast %45 : vector<8x4xf32> to vector<1x8x4xf32>
    tpu.vector_store %arg2[%c0_20, %c0_21, %c4], %48 {strides = array<i32>} : memref<1x8x32xf32, #tpu.memory_space<vmem>>, vector<1x8x4xf32>,
    %49 = vector.extract_strided_slice %4 {offsets = [0, 8], sizes = [8, 4], strides = [1, 1]} : vector<8x32xf32> to vector<8x4xf32>
    %50 = vector.extract_strided_slice %5 {offsets = [0, 8], sizes = [8, 4], strides = [1, 1]} : vector<8x32xf32> to vector<8x4xf32>
    %51 = vector.extract_strided_slice %6 {offsets = [0, 8], sizes = [8, 4], strides = [1, 1]} : vector<8x32xf32> to vector<8x4xf32>
    %cst_22 = arith.constant dense<0.000000e+00> : vector<8x8xf32>
    %52 = tpu.matmul %49, %50, %cst_22 {dimension_numbers = #tpu.dot_dimension_numbers<[1], [1], [0], [0], [0, 0, 1, 0], [], []>} : vector<8x4xf32>, vector<8x4xf32>, vector<8x8xf32> -> vector<8x8xf32>
    %cst_23 = arith.constant dense<0xFF800000> : vector<8xf32>
    %53 = vector.multi_reduction <maximumf>, %52, %cst_23 [1] : vector<8x8xf32> to vector<8xf32>
    %54 = vector.shape_cast %53 : vector<8xf32> to vector<8x1xf32>
    %55 = vector.broadcast %54 : vector<8x1xf32> to vector<8x8xf32>
    %56 = arith.subf %52, %55 : vector<8x8xf32>
    %57 = math.exp %56 : vector<8x8xf32>
    %cst_24 = arith.constant dense<0.000000e+00> : vector<8xf32>
    %58 = vector.multi_reduction <add>, %57, %cst_24 [1] : vector<8x8xf32> to vector<8xf32>
    %59 = vector.shape_cast %58 : vector<8xf32> to vector<8x1xf32>
    %60 = tpu.reciprocal %59 {approx = true} : vector<8x1xf32> -> vector<8x1xf32>
    %61 = vector.broadcast %60 : vector<8x1xf32> to vector<8x8xf32>
    %62 = arith.mulf %57, %61 : vector<8x8xf32>
    %c0_25 = arith.constant 0 : index
    %c2 = arith.constant 2 : index
    %c0_26 = arith.constant 0 : index
    %c0_27 = arith.constant 0 : index
    %63 = vector.load %arg3[%c0_25, %c2, %c0_26, %c0_27] : memref<1x8x8x8xf32, #tpu.memory_space<vmem>>, vector<1x1x8x8xf32>
    %64 = vector.shape_cast %63 : vector<1x1x8x8xf32> to vector<8x8xf32>
    %65 = vector.shape_cast %62 : vector<8x8xf32> to vector<1x1x8x8xf32>
    tpu.vector_store %arg3[%c0_25, %c2, %c0_26, %c0_27], %65 {strides = array<i32>} : memref<1x8x8x8xf32, #tpu.memory_space<vmem>>, vector<1x1x8x8xf32>,
    %cst_28 = arith.constant dense<0.000000e+00> : vector<8x4xf32>
    %66 = tpu.matmul %62, %51, %cst_28 {dimension_numbers = #tpu.dot_dimension_numbers<[1], [0], [0], [1], [0, 0, 1, 1], [], []>} : vector<8x8xf32>, vector<8x4xf32>, vector<8x4xf32> -> vector<8x4xf32>
    %c0_29 = arith.constant 0 : index
    %c0_30 = arith.constant 0 : index
    %c8 = arith.constant 8 : index
    %67 = vector.load %arg2[%c0_29, %c0_30, %c8] : memref<1x8x32xf32, #tpu.memory_space<vmem>>, vector<1x8x4xf32>
    %68 = vector.shape_cast %67 : vector<1x8x4xf32> to vector<8x4xf32>
    %69 = vector.shape_cast %66 : vector<8x4xf32> to vector<1x8x4xf32>
    tpu.vector_store %arg2[%c0_29, %c0_30, %c8], %69 {strides = array<i32>} : memref<1x8x32xf32, #tpu.memory_space<vmem>>, vector<1x8x4xf32>,
    %70 = vector.extract_strided_slice %4 {offsets = [0, 12], sizes = [8, 4], strides = [1, 1]} : vector<8x32xf32> to vector<8x4xf32>
    %71 = vector.extract_strided_slice %5 {offsets = [0, 12], sizes = [8, 4], strides = [1, 1]} : vector<8x32xf32> to vector<8x4xf32>
    %72 = vector.extract_strided_slice %6 {offsets = [0, 12], sizes = [8, 4], strides = [1, 1]} : vector<8x32xf32> to vector<8x4xf32>
    %cst_31 = arith.constant dense<0.000000e+00> : vector<8x8xf32>
    %73 = tpu.matmul %70, %71, %cst_31 {dimension_numbers = #tpu.dot_dimension_numbers<[1], [1], [0], [0], [0, 0, 1, 0], [], []>} : vector<8x4xf32>, vector<8x4xf32>, vector<8x8xf32> -> vector<8x8xf32>
    %cst_32 = arith.constant dense<0xFF800000> : vector<8xf32>
    %74 = vector.multi_reduction <maximumf>, %73, %cst_32 [1] : vector<8x8xf32> to vector<8xf32>
    %75 = vector.shape_cast %74 : vector<8xf32> to vector<8x1xf32>
    %76 = vector.broadcast %75 : vector<8x1xf32> to vector<8x8xf32>
    %77 = arith.subf %73, %76 : vector<8x8xf32>
    %78 = math.exp %77 : vector<8x8xf32>
    %cst_33 = arith.constant dense<0.000000e+00> : vector<8xf32>
    %79 = vector.multi_reduction <add>, %78, %cst_33 [1] : vector<8x8xf32> to vector<8xf32>
    %80 = vector.shape_cast %79 : vector<8xf32> to vector<8x1xf32>
    %81 = tpu.reciprocal %80 {approx = true} : vector<8x1xf32> -> vector<8x1xf32>
    %82 = vector.broadcast %81 : vector<8x1xf32> to vector<8x8xf32>
    %83 = arith.mulf %78, %82 : vector<8x8xf32>
    %c0_34 = arith.constant 0 : index
    %c3 = arith.constant 3 : index
    %c0_35 = arith.constant 0 : index
    %c0_36 = arith.constant 0 : index
    %84 = vector.load %arg3[%c0_34, %c3, %c0_35, %c0_36] : memref<1x8x8x8xf32, #tpu.memory_space<vmem>>, vector<1x1x8x8xf32>
    %85 = vector.shape_cast %84 : vector<1x1x8x8xf32> to vector<8x8xf32>
    %86 = vector.shape_cast %83 : vector<8x8xf32> to vector<1x1x8x8xf32>
    tpu.vector_store %arg3[%c0_34, %c3, %c0_35, %c0_36], %86 {strides = array<i32>} : memref<1x8x8x8xf32, #tpu.memory_space<vmem>>, vector<1x1x8x8xf32>,
    %cst_37 = arith.constant dense<0.000000e+00> : vector<8x4xf32>
    %87 = tpu.matmul %83, %72, %cst_37 {dimension_numbers = #tpu.dot_dimension_numbers<[1], [0], [0], [1], [0, 0, 1, 1], [], []>} : vector<8x8xf32>, vector<8x4xf32>, vector<8x4xf32> -> vector<8x4xf32>
    %c0_38 = arith.constant 0 : index
    %c0_39 = arith.constant 0 : index
    %c12 = arith.constant 12 : index
    %88 = vector.load %arg2[%c0_38, %c0_39, %c12] : memref<1x8x32xf32, #tpu.memory_space<vmem>>, vector<1x8x4xf32>
    %89 = vector.shape_cast %88 : vector<1x8x4xf32> to vector<8x4xf32>
    %90 = vector.shape_cast %87 : vector<8x4xf32> to vector<1x8x4xf32>
    tpu.vector_store %arg2[%c0_38, %c0_39, %c12], %90 {strides = array<i32>} : memref<1x8x32xf32, #tpu.memory_space<vmem>>, vector<1x8x4xf32>,
    %91 = vector.extract_strided_slice %4 {offsets = [0, 16], sizes = [8, 4], strides = [1, 1]} : vector<8x32xf32> to vector<8x4xf32>
    %92 = vector.extract_strided_slice %5 {offsets = [0, 16], sizes = [8, 4], strides = [1, 1]} : vector<8x32xf32> to vector<8x4xf32>
    %93 = vector.extract_strided_slice %6 {offsets = [0, 16], sizes = [8, 4], strides = [1, 1]} : vector<8x32xf32> to vector<8x4xf32>
    %cst_40 = arith.constant dense<0.000000e+00> : vector<8x8xf32>
    %94 = tpu.matmul %91, %92, %cst_40 {dimension_numbers = #tpu.dot_dimension_numbers<[1], [1], [0], [0], [0, 0, 1, 0], [], []>} : vector<8x4xf32>, vector<8x4xf32>, vector<8x8xf32> -> vector<8x8xf32>
    %cst_41 = arith.constant dense<0xFF800000> : vector<8xf32>
    %95 = vector.multi_reduction <maximumf>, %94, %cst_41 [1] : vector<8x8xf32> to vector<8xf32>
    %96 = vector.shape_cast %95 : vector<8xf32> to vector<8x1xf32>
    %97 = vector.broadcast %96 : vector<8x1xf32> to vector<8x8xf32>
    %98 = arith.subf %94, %97 : vector<8x8xf32>
    %99 = math.exp %98 : vector<8x8xf32>
    %cst_42 = arith.constant dense<0.000000e+00> : vector<8xf32>
    %100 = vector.multi_reduction <add>, %99, %cst_42 [1] : vector<8x8xf32> to vector<8xf32>
    %101 = vector.shape_cast %100 : vector<8xf32> to vector<8x1xf32>
    %102 = tpu.reciprocal %101 {approx = true} : vector<8x1xf32> -> vector<8x1xf32>
    %103 = vector.broadcast %102 : vector<8x1xf32> to vector<8x8xf32>
    %104 = arith.mulf %99, %103 : vector<8x8xf32>
    %c0_43 = arith.constant 0 : index
    %c4_44 = arith.constant 4 : index
    %c0_45 = arith.constant 0 : index
    %c0_46 = arith.constant 0 : index
    %105 = vector.load %arg3[%c0_43, %c4_44, %c0_45, %c0_46] : memref<1x8x8x8xf32, #tpu.memory_space<vmem>>, vector<1x1x8x8xf32>
    %106 = vector.shape_cast %105 : vector<1x1x8x8xf32> to vector<8x8xf32>
    %107 = vector.shape_cast %104 : vector<8x8xf32> to vector<1x1x8x8xf32>
    tpu.vector_store %arg3[%c0_43, %c4_44, %c0_45, %c0_46], %107 {strides = array<i32>} : memref<1x8x8x8xf32, #tpu.memory_space<vmem>>, vector<1x1x8x8xf32>,
    %cst_47 = arith.constant dense<0.000000e+00> : vector<8x4xf32>
    %108 = tpu.matmul %104, %93, %cst_47 {dimension_numbers = #tpu.dot_dimension_numbers<[1], [0], [0], [1], [0, 0, 1, 1], [], []>} : vector<8x8xf32>, vector<8x4xf32>, vector<8x4xf32> -> vector<8x4xf32>
    %c0_48 = arith.constant 0 : index
    %c0_49 = arith.constant 0 : index
    %c16 = arith.constant 16 : index
    %109 = vector.load %arg2[%c0_48, %c0_49, %c16] : memref<1x8x32xf32, #tpu.memory_space<vmem>>, vector<1x8x4xf32>
    %110 = vector.shape_cast %109 : vector<1x8x4xf32> to vector<8x4xf32>
    %111 = vector.shape_cast %108 : vector<8x4xf32> to vector<1x8x4xf32>
    tpu.vector_store %arg2[%c0_48, %c0_49, %c16], %111 {strides = array<i32>} : memref<1x8x32xf32, #tpu.memory_space<vmem>>, vector<1x8x4xf32>,
    %112 = vector.extract_strided_slice %4 {offsets = [0, 20], sizes = [8, 4], strides = [1, 1]} : vector<8x32xf32> to vector<8x4xf32>
    %113 = vector.extract_strided_slice %5 {offsets = [0, 20], sizes = [8, 4], strides = [1, 1]} : vector<8x32xf32> to vector<8x4xf32>
    %114 = vector.extract_strided_slice %6 {offsets = [0, 20], sizes = [8, 4], strides = [1, 1]} : vector<8x32xf32> to vector<8x4xf32>
    %cst_50 = arith.constant dense<0.000000e+00> : vector<8x8xf32>
    %115 = tpu.matmul %112, %113, %cst_50 {dimension_numbers = #tpu.dot_dimension_numbers<[1], [1], [0], [0], [0, 0, 1, 0], [], []>} : vector<8x4xf32>, vector<8x4xf32>, vector<8x8xf32> -> vector<8x8xf32>
    %cst_51 = arith.constant dense<0xFF800000> : vector<8xf32>
    %116 = vector.multi_reduction <maximumf>, %115, %cst_51 [1] : vector<8x8xf32> to vector<8xf32>
    %117 = vector.shape_cast %116 : vector<8xf32> to vector<8x1xf32>
    %118 = vector.broadcast %117 : vector<8x1xf32> to vector<8x8xf32>
    %119 = arith.subf %115, %118 : vector<8x8xf32>
    %120 = math.exp %119 : vector<8x8xf32>
    %cst_52 = arith.constant dense<0.000000e+00> : vector<8xf32>
    %121 = vector.multi_reduction <add>, %120, %cst_52 [1] : vector<8x8xf32> to vector<8xf32>
    %122 = vector.shape_cast %121 : vector<8xf32> to vector<8x1xf32>
    %123 = tpu.reciprocal %122 {approx = true} : vector<8x1xf32> -> vector<8x1xf32>
    %124 = vector.broadcast %123 : vector<8x1xf32> to vector<8x8xf32>
    %125 = arith.mulf %120, %124 : vector<8x8xf32>
    %c0_53 = arith.constant 0 : index
    %c5 = arith.constant 5 : index
    %c0_54 = arith.constant 0 : index
    %c0_55 = arith.constant 0 : index
    %126 = vector.load %arg3[%c0_53, %c5, %c0_54, %c0_55] : memref<1x8x8x8xf32, #tpu.memory_space<vmem>>, vector<1x1x8x8xf32>
    %127 = vector.shape_cast %126 : vector<1x1x8x8xf32> to vector<8x8xf32>
    %128 = vector.shape_cast %125 : vector<8x8xf32> to vector<1x1x8x8xf32>
    tpu.vector_store %arg3[%c0_53, %c5, %c0_54, %c0_55], %128 {strides = array<i32>} : memref<1x8x8x8xf32, #tpu.memory_space<vmem>>, vector<1x1x8x8xf32>,
    %cst_56 = arith.constant dense<0.000000e+00> : vector<8x4xf32>
    %129 = tpu.matmul %125, %114, %cst_56 {dimension_numbers = #tpu.dot_dimension_numbers<[1], [0], [0], [1], [0, 0, 1, 1], [], []>} : vector<8x8xf32>, vector<8x4xf32>, vector<8x4xf32> -> vector<8x4xf32>
    %c0_57 = arith.constant 0 : index
    %c0_58 = arith.constant 0 : index
    %c20 = arith.constant 20 : index
    %130 = vector.load %arg2[%c0_57, %c0_58, %c20] : memref<1x8x32xf32, #tpu.memory_space<vmem>>, vector<1x8x4xf32>
    %131 = vector.shape_cast %130 : vector<1x8x4xf32> to vector<8x4xf32>
    %132 = vector.shape_cast %129 : vector<8x4xf32> to vector<1x8x4xf32>
    tpu.vector_store %arg2[%c0_57, %c0_58, %c20], %132 {strides = array<i32>} : memref<1x8x32xf32, #tpu.memory_space<vmem>>, vector<1x8x4xf32>,
    %133 = vector.extract_strided_slice %4 {offsets = [0, 24], sizes = [8, 4], strides = [1, 1]} : vector<8x32xf32> to vector<8x4xf32>
    %134 = vector.extract_strided_slice %5 {offsets = [0, 24], sizes = [8, 4], strides = [1, 1]} : vector<8x32xf32> to vector<8x4xf32>
    %135 = vector.extract_strided_slice %6 {offsets = [0, 24], sizes = [8, 4], strides = [1, 1]} : vector<8x32xf32> to vector<8x4xf32>
    %cst_59 = arith.constant dense<0.000000e+00> : vector<8x8xf32>
    %136 = tpu.matmul %133, %134, %cst_59 {dimension_numbers = #tpu.dot_dimension_numbers<[1], [1], [0], [0], [0, 0, 1, 0], [], []>} : vector<8x4xf32>, vector<8x4xf32>, vector<8x8xf32> -> vector<8x8xf32>
    %cst_60 = arith.constant dense<0xFF800000> : vector<8xf32>
    %137 = vector.multi_reduction <maximumf>, %136, %cst_60 [1] : vector<8x8xf32> to vector<8xf32>
    %138 = vector.shape_cast %137 : vector<8xf32> to vector<8x1xf32>
    %139 = vector.broadcast %138 : vector<8x1xf32> to vector<8x8xf32>
    %140 = arith.subf %136, %139 : vector<8x8xf32>
    %141 = math.exp %140 : vector<8x8xf32>
    %cst_61 = arith.constant dense<0.000000e+00> : vector<8xf32>
    %142 = vector.multi_reduction <add>, %141, %cst_61 [1] : vector<8x8xf32> to vector<8xf32>
    %143 = vector.shape_cast %142 : vector<8xf32> to vector<8x1xf32>
    %144 = tpu.reciprocal %143 {approx = true} : vector<8x1xf32> -> vector<8x1xf32>
    %145 = vector.broadcast %144 : vector<8x1xf32> to vector<8x8xf32>
    %146 = arith.mulf %141, %145 : vector<8x8xf32>
    %c0_62 = arith.constant 0 : index
    %c6 = arith.constant 6 : index
    %c0_63 = arith.constant 0 : index
    %c0_64 = arith.constant 0 : index
    %147 = vector.load %arg3[%c0_62, %c6, %c0_63, %c0_64] : memref<1x8x8x8xf32, #tpu.memory_space<vmem>>, vector<1x1x8x8xf32>
    %148 = vector.shape_cast %147 : vector<1x1x8x8xf32> to vector<8x8xf32>
    %149 = vector.shape_cast %146 : vector<8x8xf32> to vector<1x1x8x8xf32>
    tpu.vector_store %arg3[%c0_62, %c6, %c0_63, %c0_64], %149 {strides = array<i32>} : memref<1x8x8x8xf32, #tpu.memory_space<vmem>>, vector<1x1x8x8xf32>,
    %cst_65 = arith.constant dense<0.000000e+00> : vector<8x4xf32>
    %150 = tpu.matmul %146, %135, %cst_65 {dimension_numbers = #tpu.dot_dimension_numbers<[1], [0], [0], [1], [0, 0, 1, 1], [], []>} : vector<8x8xf32>, vector<8x4xf32>, vector<8x4xf32> -> vector<8x4xf32>
    %c0_66 = arith.constant 0 : index
    %c0_67 = arith.constant 0 : index
    %c24 = arith.constant 24 : index
    %151 = vector.load %arg2[%c0_66, %c0_67, %c24] : memref<1x8x32xf32, #tpu.memory_space<vmem>>, vector<1x8x4xf32>
    %152 = vector.shape_cast %151 : vector<1x8x4xf32> to vector<8x4xf32>
    %153 = vector.shape_cast %150 : vector<8x4xf32> to vector<1x8x4xf32>
    tpu.vector_store %arg2[%c0_66, %c0_67, %c24], %153 {strides = array<i32>} : memref<1x8x32xf32, #tpu.memory_space<vmem>>, vector<1x8x4xf32>,
    %154 = vector.extract_strided_slice %4 {offsets = [0, 28], sizes = [8, 4], strides = [1, 1]} : vector<8x32xf32> to vector<8x4xf32>
    %155 = vector.extract_strided_slice %5 {offsets = [0, 28], sizes = [8, 4], strides = [1, 1]} : vector<8x32xf32> to vector<8x4xf32>
    %156 = vector.extract_strided_slice %6 {offsets = [0, 28], sizes = [8, 4], strides = [1, 1]} : vector<8x32xf32> to vector<8x4xf32>
    %cst_68 = arith.constant dense<0.000000e+00> : vector<8x8xf32>
    %157 = tpu.matmul %154, %155, %cst_68 {dimension_numbers = #tpu.dot_dimension_numbers<[1], [1], [0], [0], [0, 0, 1, 0], [], []>} : vector<8x4xf32>, vector<8x4xf32>, vector<8x8xf32> -> vector<8x8xf32>
    %cst_69 = arith.constant dense<0xFF800000> : vector<8xf32>
    %158 = vector.multi_reduction <maximumf>, %157, %cst_69 [1] : vector<8x8xf32> to vector<8xf32>
    %159 = vector.shape_cast %158 : vector<8xf32> to vector<8x1xf32>
    %160 = vector.broadcast %159 : vector<8x1xf32> to vector<8x8xf32>
    %161 = arith.subf %157, %160 : vector<8x8xf32>
    %162 = math.exp %161 : vector<8x8xf32>
    %cst_70 = arith.constant dense<0.000000e+00> : vector<8xf32>
    %163 = vector.multi_reduction <add>, %162, %cst_70 [1] : vector<8x8xf32> to vector<8xf32>
    %164 = vector.shape_cast %163 : vector<8xf32> to vector<8x1xf32>
    %165 = tpu.reciprocal %164 {approx = true} : vector<8x1xf32> -> vector<8x1xf32>
    %166 = vector.broadcast %165 : vector<8x1xf32> to vector<8x8xf32>
    %167 = arith.mulf %162, %166 : vector<8x8xf32>
    %c0_71 = arith.constant 0 : index
    %c7 = arith.constant 7 : index
    %c0_72 = arith.constant 0 : index
    %c0_73 = arith.constant 0 : index
    %168 = vector.load %arg3[%c0_71, %c7, %c0_72, %c0_73] : memref<1x8x8x8xf32, #tpu.memory_space<vmem>>, vector<1x1x8x8xf32>
    %169 = vector.shape_cast %168 : vector<1x1x8x8xf32> to vector<8x8xf32>
    %170 = vector.shape_cast %167 : vector<8x8xf32> to vector<1x1x8x8xf32>
    tpu.vector_store %arg3[%c0_71, %c7, %c0_72, %c0_73], %170 {strides = array<i32>} : memref<1x8x8x8xf32, #tpu.memory_space<vmem>>, vector<1x1x8x8xf32>,
    %cst_74 = arith.constant dense<0.000000e+00> : vector<8x4xf32>
    %171 = tpu.matmul %167, %156, %cst_74 {dimension_numbers = #tpu.dot_dimension_numbers<[1], [0], [0], [1], [0, 0, 1, 1], [], []>} : vector<8x8xf32>, vector<8x4xf32>, vector<8x4xf32> -> vector<8x4xf32>
    %c0_75 = arith.constant 0 : index
    %c0_76 = arith.constant 0 : index
    %c28 = arith.constant 28 : index
    %172 = vector.load %arg2[%c0_75, %c0_76, %c28] : memref<1x8x32xf32, #tpu.memory_space<vmem>>, vector<1x8x4xf32>
    %173 = vector.shape_cast %172 : vector<1x8x4xf32> to vector<8x4xf32>
    %174 = vector.shape_cast %171 : vector<8x4xf32> to vector<1x8x4xf32>
    tpu.vector_store %arg2[%c0_75, %c0_76, %c28], %174 {strides = array<i32>} : memref<1x8x32xf32, #tpu.memory_space<vmem>>, vector<1x8x4xf32>,
    return
  }
  func.func @transform_0(%arg0: i32) -> (i32, i32, i32) {
    %c0_i32 = arith.constant 0 : i32
    %c0_i32_0 = arith.constant 0 : i32
    %c0_i32_1 = arith.constant 0 : i32
    return %arg0, %c0_i32, %c0_i32_0 : i32, i32, i32
  }
  func.func @transform_1(%arg0: i32) -> (i32, i32, i32) {
    %c0_i32 = arith.constant 0 : i32
    %c0_i32_0 = arith.constant 0 : i32
    %c0_i32_1 = arith.constant 0 : i32
    return %arg0, %c0_i32, %c0_i32_0 : i32, i32, i32
  }
  func.func @transform_2(%arg0: i32) -> (i32, i32, i32, i32) {
    %c0_i32 = arith.constant 0 : i32
    %c0_i32_0 = arith.constant 0 : i32
    %c0_i32_1 = arith.constant 0 : i32
    %c0_i32_2 = arith.constant 0 : i32
    return %arg0, %c0_i32, %c0_i32_0, %c0_i32_1 : i32, i32, i32, i32
  }
}

</mosaic_0001>

<llo_original>
// kernel: attention_forward.5
$region0: #{attention_forward.5}
  #allocation0 [shape = 'u32[]', space=smem, size = 0x4, offset = 0x4, fixed_abs, tag = 'smem constant byte address 0x4 - core index']
  #allocation1 [shape = 'u32[144,128]{1,0:T(1,128)}', space=vmem, size = 0x12000, scoped, tag = 'internal scratch']
  #allocation2 [shape = 'f32[16,32]{1,0:T(8,128)}', space=vmem, size = 0x2000, scoped, tag = 'scratch operand']
  %s0 = inlined_call_operand.vmem [shape: f32[16,32], index: 0, kind: input, shape index: {}]
  %s1 = inlined_call_operand.vmem [shape: f32[32,32], index: 1, kind: input, shape index: {}]
  %s2 = inlined_call_operand.vmem [shape: f32[1,32], index: 2, kind: input, shape index: {}]
  %s3 = inlined_call_operand.hbm [shape: f32[16,32], index: 3, kind: output, shape index: {}]
  %s4 = sld [smem:[#allocation0]]
  $region30: #{attention_forward.5} parent=0
    _
  %s6 = ssub.s32 1, %s4
  %s7 = scalar_select 0, %s6, %s4
  $region1: #{attention_forward.5} parent=0
    #allocation3 [shape = 'u8[8192]{0}', space=vmem, size = 0x2000, scoped, tag = 'output window, operand 0, single buffered']
    #allocation4 [shape = 's32[1]{0}', space=sflag, size = 0x4, scoped, tag = 'scoped memory for attention_forward.5']
    %8 = vsyncpa [#allocation4], 0
    // Predicated region
    $region2: #{attention_forward.5} parent=1 // pred_check
      _
    $region3: #{attention_forward.5} parent=1 // pred_check_branch
      %10 = sbr.rel (0) target = $region5
    $region4: #{attention_forward.5} parent=1 // pred_region
      _
    $region5: #{attention_forward.5} parent=1 // pred_fallthru
      _
    // Predicated region
    $region6: #{attention_forward.5} parent=1 // pred_check
      _
    $region7: #{attention_forward.5} parent=1 // pred_check_branch
      %12 = sbr.rel (0) target = $region9
    $region8: #{attention_forward.5} parent=1 // pred_region
      _
    $region9: #{attention_forward.5} parent=1 // pred_fallthru
      _
    // Predicated region
    $region10: #{attention_forward.5} parent=1 // pred_check
      _
    $region11: #{attention_forward.5} parent=1 // pred_check_branch
      %14 = sbr.rel (0) target = $region13
    $region12: #{attention_forward.5} parent=1 // pred_region
      _
    $region13: #{attention_forward.5} parent=1 // pred_fallthru
      _
    %p15 = scmp.eq.s32.totalorder 0, 0
    // Predicated region
    $region14: #{attention_forward.5} parent=1 // pred_check
      %p16 = pneg %p15
    $region15: #{attention_forward.5} parent=1 // pred_check_branch
      %18 = sbr.rel (%p16) target = $region17
    $region16: #{attention_forward.5} parent=1 // pred_region
      %vm19 = vcmask 261120
      %20 = vst.msk [vmem:[#allocation2] sm:$0xff] %vm19, 0.0
      %21 = vst.msk [vmem:[#allocation2 + $0x8] sm:$0xff] %vm19, 0.0
    $region17: #{attention_forward.5} parent=1 // pred_fallthru
      _
    %v22 = vld [vmem:[#allocation2] sm:$0xff]
    %v23 = vld [vmem:[#allocation2 + $0x8] sm:$0xff]
    %v24 = vld [vmem:[%s0] sm:$0xff]
    %v25 = vld [vmem:[%s0 + $0x8] sm:$0xff]
    %v26 = vld [vmem:[%s1] sm:$0xff]
    %v27 = vld [vmem:[%s1 + $0x8] sm:$0xff]
    %v28 = vld [vmem:[%s1 + $0x10] sm:$0xff]
    %v29 = vld [vmem:[%s1 + $0x18] sm:$0xff]
    %vm30 = vcmask 261120
    %v32 = vsel %vm30, %v24, 0
    %v35 = vsel %vm30, %v25, 0
    %37 = vmatprep.subr.mxu0 0.0
    %38 = vmatpush1.msra.mxu0 0.0
    %39 = vmatprep.subr.mxu0 0.0
    %40 = vmatpush1.msra.mxu0 0.0
    %41 = vmatprep.subr.mxu0 0.0
    %42 = vmatpush1.msra.mxu0 0.0
    %43 = vmatprep.subr.mxu0 0.0
    %44 = vmatpush1.msra.mxu0 0.0
    %45 = vmatprep.subr.mxu0 0.0
    %46 = vmatpush1.msra.mxu0 0.0
    %47 = vmatprep.subr.mxu0 0.0
    %48 = vmatpush1.msra.mxu0 0.0
    %49 = vmatprep.subr.mxu0 0.0
    %50 = vmatpush1.msra.mxu0 0.0
    %51 = vmatprep.subr.mxu0 0.0
    %52 = vmatpush1.msra.mxu0 0.0
    %53 = vmatprep.subr.mxu0 0.0
    %54 = vmatpush1.msra.mxu0 0.0
    %55 = vmatprep.subr.mxu0 0.0
    %56 = vmatpush1.msra.mxu0 0.0
    %57 = vmatprep.subr.mxu0 0.0
    %58 = vmatpush1.msra.mxu0 0.0
    %59 = vmatprep.subr.mxu0 0.0
    %60 = vmatpush1.msra.mxu0 0.0
    %61 = vmatprep.subr.mxu0 0.0
    %62 = vmatpush1.msra.mxu0 %v29
    %63 = vmatprep.subr.mxu0 0.0
    %64 = vmatpush1.msra.mxu0 %v28
    %65 = vmatprep.subr.mxu0 0.0
    %66 = vmatpush1.msra.mxu0 %v27
    %67 = vmatprep.subr.mxu0 0.0
    %68 = vmatpush1.msra.mxu0 %v26
    %69 = vmatprep.subr.mxu0 0.0
    %70 = vmatpush2.msra.mxu0 0.0
    %71 = vmatprep.subr.mxu0 0.0
    %72 = vmatpush2.msra.mxu0 0.0
    %73 = vmatprep.subr.mxu0 0.0
    %74 = vmatpush2.msra.mxu0 0.0
    %75 = vmatprep.subr.mxu0 0.0
    %76 = vmatpush2.msra.mxu0 0.0
    %77 = vmatprep.subr.mxu0 0.0
    %78 = vmatpush2.msra.mxu0 0.0
    %79 = vmatprep.subr.mxu0 0.0
    %80 = vmatpush2.msra.mxu0 0.0
    %81 = vmatprep.subr.mxu0 0.0
    %82 = vmatpush2.msra.mxu0 0.0
    %83 = vmatprep.subr.mxu0 0.0
    %84 = vmatpush2.msra.mxu0 0.0
    %85 = vmatprep.subr.mxu0 0.0
    %86 = vmatpush2.msra.mxu0 0.0
    %87 = vmatprep.subr.mxu0 0.0
    %88 = vmatpush2.msra.mxu0 0.0
    %89 = vmatprep.subr.mxu0 0.0
    %90 = vmatpush2.msra.mxu0 0.0
    %91 = vmatprep.subr.mxu0 0.0
    %92 = vmatpush2.msra.mxu0 0.0
    %93 = vmatprep.subr.mxu0 0.0
    %94 = vmatpush2.msra.mxu0 0.0
    %95 = vmatprep.subr.mxu0 0.0
    %96 = vmatpush2.msra.mxu0 0.0
    %97 = vmatprep.subr.mxu0 0.0
    %98 = vmatpush2.msra.mxu0 0.0
    %99 = vmatprep.subr.mxu0 0.0
    %100 = vmatpush2.msra.mxu0 0.0
    %101 = vmatprep.mubr.f32.mxu0 0.0
    %102 = vmatmul.mubr.f32.gmra.mxu0 %v32
    %v103 = vpop.f32.mrf.mxu0
    %v104 = vadd.f32 0.0, %v103
    %v105 = vpop.f32.mrf.mxu0
    %106 = vmatprep.mubr.f32.mxu0 0.0
    %107 = vmatmul.mubr.f32.gmra.mxu0 %v35
    %v108 = vpop.f32.mrf.mxu0
    %v109 = vadd.f32 0.0, %v108
    %v110 = vpop.f32.mrf.mxu0
    %111 = vdwg.mxu0
    %v112 = vadd.f32 %v22, %v104
    %v113 = vadd.f32 %v23, %v109
    %114 = vst.msk [vmem:[#allocation2] sm:$0xff] %vm30, %v112
    %115 = vst.msk [vmem:[#allocation2 + $0x8] sm:$0xff] %vm30, %v113
    // Predicated region
    $region18: #{attention_forward.5} parent=1 // pred_check
      %p116 = pneg %p15
    $region19: #{attention_forward.5} parent=1 // pred_check_branch
      %118 = sbr.rel (%p116) target = $region21
    $region20: #{attention_forward.5} parent=1 // pred_region
      %v119 = vld [vmem:[#allocation2] sm:$0xff]
      %v120 = vld [vmem:[#allocation2 + $0x8] sm:$0xff]
      %v121 = vld [vmem:[%s2] sm:$0x1]
      %v123 = vlaneseq
      %v124 = vshrl.u32 %v123, 7
      %v125 = vsub.s32 0, %v124
      %v126 = vrot.slane %v121, %v125
      %v128 = vadd.f32 %v119, %v126
      %v129 = vadd.f32 %v120, %v126
      %130 = vst.msk [vmem:[#allocation3] sm:$0xff] %vm30, %v128
      %131 = vst.msk [vmem:[#allocation3 + $0x8] sm:$0xff] %vm30, %v129
    $region21: #{attention_forward.5} parent=1 // pred_fallthru
      _
    // Predicated region
    $region22: #{attention_forward.5} parent=1 // pred_check
      _
    $region23: #{attention_forward.5} parent=1 // pred_check_branch
      %133 = sbr.rel (0) target = $region25
    $region24: #{attention_forward.5} parent=1 // pred_region
      %s135 = ssub.s32 256, 256
      %136 = vsyncadd [#allocation4], %s135
      %s137 = sshll.u32 [#allocation3], 4
      %s138 = int_to_ptr.vmem [resolvable:$true] %s137
      %143 = dma.vmem_to_hbm [thread:$0]  %s138, 256, %s3, [#allocation4], 128, 128, 8
    $region25: #{attention_forward.5} parent=1 // pred_fallthru
      _
    // Predicated region
    $region26: #{attention_forward.5} parent=1 // pred_check
      _
    $region27: #{attention_forward.5} parent=1 // pred_check_branch
      %145 = sbr.rel (0) target = $region29
    $region28: #{attention_forward.5} parent=1 // pred_region
      %146 = dma.done [#allocation4], 256
    $region29: #{attention_forward.5} parent=1 // pred_fallthru
      _
    %147 = vsyncpa [#allocation4], 1

// kernel: attention_forward.3
$region0: #{attention_forward.3}
  #allocation0 [shape = 'u32[]', space=smem, size = 0x4, offset = 0x4, fixed_abs, tag = 'smem constant byte address 0x4 - core index']
  #allocation1 [shape = 'u32[144,128]{1,0:T(1,128)}', space=vmem, size = 0x12000, scoped, tag = 'internal scratch']
  #allocation2 [shape = 'f32[16,96]{1,0:T(8,128)}', space=vmem, size = 0x2000, scoped, tag = 'scratch operand']
  %s0 = inlined_call_operand.hbm [shape: f32[16,32], index: 0, kind: input, shape index: {}]
  %s1 = inlined_call_operand.hbm [shape: f32[32,96], index: 1, kind: input, shape index: {}]
  %s2 = inlined_call_operand.vmem [shape: f32[16,96], index: 2, kind: output, shape index: {}]
  %s3 = sld [smem:[#allocation0]]
  $region34: #{attention_forward.3} parent=0
    _
  %s5 = ssub.s32 1, %s3
  %s6 = scalar_select 0, %s5, %s3
  $region1: #{attention_forward.3} parent=0
    #allocation3 [shape = 'u8[8192]{0}', space=vmem, size = 0x2000, scoped, tag = 'input window, operand 0, single buffered']
    #allocation4 [shape = 's32[1]{0}', space=sflag, size = 0x4, scoped, tag = 'scoped memory for attention_forward.3']
    #allocation5 [shape = 'u8[16384]{0}', space=vmem, size = 0x4000, scoped, tag = 'input window, operand 1, single buffered']
    #allocation6 [shape = 's32[1]{0}', space=sflag, size = 0x4, scoped, tag = 'scoped memory for attention_forward.3']
    %7 = vsyncpa [#allocation4], 0
    %8 = vsyncpa [#allocation6], 0
    // Predicated region
    $region2: #{attention_forward.3} parent=1 // pred_check
      _
    $region3: #{attention_forward.3} parent=1 // pred_check_branch
      %10 = sbr.rel (0) target = $region5
    $region4: #{attention_forward.3} parent=1 // pred_region
      %s12 = ssub.s32 256, 256
      %13 = vsyncadd [#allocation4], %s12
      %s14 = sshll.u32 [#allocation3], 4
      %s15 = int_to_ptr.vmem [resolvable:$true] %s14
      %20 = dma.hbm_to_vmem [thread:$0]  %s0, 256, %s15, [#allocation4], 128, 128, 8
    $region5: #{attention_forward.3} parent=1 // pred_fallthru
      _
    // Predicated region
    $region6: #{attention_forward.3} parent=1 // pred_check
      _
    $region7: #{attention_forward.3} parent=1 // pred_check_branch
      %22 = sbr.rel (0) target = $region9
    $region8: #{attention_forward.3} parent=1 // pred_region
      %s24 = ssub.s32 512, 512
      %25 = vsyncadd [#allocation6], %s24
      %s26 = sshll.u32 [#allocation5], 4
      %s27 = int_to_ptr.vmem [resolvable:$true] %s26
      %32 = dma.hbm_to_vmem [thread:$0]  %s1, 512, %s27, [#allocation6], 128, 128, 8
    $region9: #{attention_forward.3} parent=1 // pred_fallthru
      _
    // Predicated region
    $region10: #{attention_forward.3} parent=1 // pred_check
      _
    $region11: #{attention_forward.3} parent=1 // pred_check_branch
      %34 = sbr.rel (0) target = $region13
    $region12: #{attention_forward.3} parent=1 // pred_region
      %35 = dma.done [#allocation4], 256
    $region13: #{attention_forward.3} parent=1 // pred_fallthru
      _
    // Predicated region
    $region14: #{attention_forward.3} parent=1 // pred_check
      _
    $region15: #{attention_forward.3} parent=1 // pred_check_branch
      %37 = sbr.rel (0) target = $region17
    $region16: #{attention_forward.3} parent=1 // pred_region
      %38 = dma.done [#allocation6], 512
    $region17: #{attention_forward.3} parent=1 // pred_fallthru
      _
    %p39 = scmp.eq.s32.totalorder 0, 0
    // Predicated region
    $region18: #{attention_forward.3} parent=1 // pred_check
      %p40 = pneg %p39
    $region19: #{attention_forward.3} parent=1 // pred_check_branch
      %42 = sbr.rel (%p40) target = $region21
    $region20: #{attention_forward.3} parent=1 // pred_region
      %vm43 = vcmask 785408
      %44 = vst.msk [vmem:[#allocation2] sm:$0xff] %vm43, 0.0
      %45 = vst.msk [vmem:[#allocation2 + $0x8] sm:$0xff] %vm43, 0.0
    $region21: #{attention_forward.3} parent=1 // pred_fallthru
      _
    %v46 = vld [vmem:[#allocation2] sm:$0xff]
    %v47 = vld [vmem:[#allocation2 + $0x8] sm:$0xff]
    %v48 = vld [vmem:[#allocation3] sm:$0xff]
    %v49 = vld [vmem:[#allocation3 + $0x8] sm:$0xff]
    %v50 = vld [vmem:[#allocation5] sm:$0xff]
    %v51 = vld [vmem:[#allocation5 + $0x8] sm:$0xff]
    %v52 = vld [vmem:[#allocation5 + $0x10] sm:$0xff]
    %v53 = vld [vmem:[#allocation5 + $0x18] sm:$0xff]
    %vm54 = vcmask 261120
    %v56 = vsel %vm54, %v48, 0
    %v59 = vsel %vm54, %v49, 0
    %61 = vmatprep.subr.mxu0 0.0
    %62 = vmatpush1.msra.mxu0 0.0
    %63 = vmatprep.subr.mxu0 0.0
    %64 = vmatpush1.msra.mxu0 0.0
    %65 = vmatprep.subr.mxu0 0.0
    %66 = vmatpush1.msra.mxu0 0.0
    %67 = vmatprep.subr.mxu0 0.0
    %68 = vmatpush1.msra.mxu0 0.0
    %69 = vmatprep.subr.mxu0 0.0
    %70 = vmatpush1.msra.mxu0 0.0
    %71 = vmatprep.subr.mxu0 0.0
    %72 = vmatpush1.msra.mxu0 0.0
    %73 = vmatprep.subr.mxu0 0.0
    %74 = vmatpush1.msra.mxu0 0.0
    %75 = vmatprep.subr.mxu0 0.0
    %76 = vmatpush1.msra.mxu0 0.0
    %77 = vmatprep.subr.mxu0 0.0
    %78 = vmatpush1.msra.mxu0 0.0
    %79 = vmatprep.subr.mxu0 0.0
    %80 = vmatpush1.msra.mxu0 0.0
    %81 = vmatprep.subr.mxu0 0.0
    %82 = vmatpush1.msra.mxu0 0.0
    %83 = vmatprep.subr.mxu0 0.0
    %84 = vmatpush1.msra.mxu0 0.0
    %85 = vmatprep.subr.mxu0 0.0
    %86 = vmatpush1.msra.mxu0 %v53
    %87 = vmatprep.subr.mxu0 0.0
    %88 = vmatpush1.msra.mxu0 %v52
    %89 = vmatprep.subr.mxu0 0.0
    %90 = vmatpush1.msra.mxu0 %v51
    %91 = vmatprep.subr.mxu0 0.0
    %92 = vmatpush1.msra.mxu0 %v50
    %93 = vmatprep.subr.mxu0 0.0
    %94 = vmatpush2.msra.mxu0 0.0
    %95 = vmatprep.subr.mxu0 0.0
    %96 = vmatpush2.msra.mxu0 0.0
    %97 = vmatprep.subr.mxu0 0.0
    %98 = vmatpush2.msra.mxu0 0.0
    %99 = vmatprep.subr.mxu0 0.0
    %100 = vmatpush2.msra.mxu0 0.0
    %101 = vmatprep.subr.mxu0 0.0
    %102 = vmatpush2.msra.mxu0 0.0
    %103 = vmatprep.subr.mxu0 0.0
    %104 = vmatpush2.msra.mxu0 0.0
    %105 = vmatprep.subr.mxu0 0.0
    %106 = vmatpush2.msra.mxu0 0.0
    %107 = vmatprep.subr.mxu0 0.0
    %108 = vmatpush2.msra.mxu0 0.0
    %109 = vmatprep.subr.mxu0 0.0
    %110 = vmatpush2.msra.mxu0 0.0
    %111 = vmatprep.subr.mxu0 0.0
    %112 = vmatpush2.msra.mxu0 0.0
    %113 = vmatprep.subr.mxu0 0.0
    %114 = vmatpush2.msra.mxu0 0.0
    %115 = vmatprep.subr.mxu0 0.0
    %116 = vmatpush2.msra.mxu0 0.0
    %117 = vmatprep.subr.mxu0 0.0
    %118 = vmatpush2.msra.mxu0 0.0
    %119 = vmatprep.subr.mxu0 0.0
    %120 = vmatpush2.msra.mxu0 0.0
    %121 = vmatprep.subr.mxu0 0.0
    %122 = vmatpush2.msra.mxu0 0.0
    %123 = vmatprep.subr.mxu0 0.0
    %124 = vmatpush2.msra.mxu0 0.0
    %125 = vmatprep.mubr.f32.mxu0 0.0
    %126 = vmatmul.mubr.f32.gmra.mxu0 %v56
    %v127 = vpop.f32.mrf.mxu0
    %v128 = vadd.f32 0.0, %v127
    %v129 = vpop.f32.mrf.mxu0
    %130 = vmatprep.mubr.f32.mxu0 0.0
    %131 = vmatmul.mubr.f32.gmra.mxu0 %v59
    %v132 = vpop.f32.mrf.mxu0
    %v133 = vadd.f32 0.0, %v132
    %v134 = vpop.f32.mrf.mxu0
    %135 = vdwg.mxu0
    %v136 = vadd.f32 %v46, %v128
    %v137 = vadd.f32 %v47, %v133
    %vm138 = vcmask 785408
    %139 = vst.msk [vmem:[#allocation2] sm:$0xff] %vm138, %v136
    %140 = vst.msk [vmem:[#allocation2 + $0x8] sm:$0xff] %vm138, %v137
    // Predicated region
    $region22: #{attention_forward.3} parent=1 // pred_check
      %p141 = pneg %p39
    $region23: #{attention_forward.3} parent=1 // pred_check_branch
      %143 = sbr.rel (%p141) target = $region25
    $region24: #{attention_forward.3} parent=1 // pred_region
      %v144 = vld [vmem:[#allocation2] sm:$0xff]
      %v145 = vld [vmem:[#allocation2 + $0x8] sm:$0xff]
      %146 = vst.msk [vmem:[%s2] sm:$0xff] %vm138, %v144
      %147 = vst.msk [vmem:[%s2 + $0x8] sm:$0xff] %vm138, %v145
    $region25: #{attention_forward.3} parent=1 // pred_fallthru
      _
    // Predicated region
    $region26: #{attention_forward.3} parent=1 // pred_check
      _
    $region27: #{attention_forward.3} parent=1 // pred_check_branch
      %149 = sbr.rel (0) target = $region29
    $region28: #{attention_forward.3} parent=1 // pred_region
      _
    $region29: #{attention_forward.3} parent=1 // pred_fallthru
      _
    // Predicated region
    $region30: #{attention_forward.3} parent=1 // pred_check
      _
    $region31: #{attention_forward.3} parent=1 // pred_check_branch
      %151 = sbr.rel (0) target = $region33
    $region32: #{attention_forward.3} parent=1 // pred_region
      _
    $region33: #{attention_forward.3} parent=1 // pred_fallthru
      _
    %152 = vsyncpa [#allocation4], 1
    %153 = vsyncpa [#allocation6], 1

// kernel: attention_forward.4
$region0: #{attention_forward.4}
  #allocation0 [shape = 'u32[]', space=smem, size = 0x4, offset = 0x4, fixed_abs, tag = 'smem constant byte address 0x4 - core index']
  #allocation1 [shape = 'u32[144,128]{1,0:T(1,128)}', space=vmem, size = 0x12000, scoped, tag = 'internal scratch']
  %s0 = inlined_call_operand.vmem [shape: f32[2,8,96], index: 0, kind: input, shape index: {}]
  %s1 = inlined_call_operand.vmem [shape: f32[2,8,32], index: 1, kind: output, shape index: {0}]
  %s2 = inlined_call_operand.hbm [shape: f32[2,8,8,8], index: 2, kind: output, shape index: {1}]
  %3 = xla_tuple %s1, %s2
  %s4 = sld [smem:[#allocation0]]
  $region45: #{attention_forward.4} parent=0
    _
  %s6 = ssub.s32 1, %s4
  %s7 = scalar_select 0, %s6, %s4
  $region1: #{attention_forward.4} parent=0
    #allocation2 [shape = 'u8[65536]{0}', space=vmem, size = 0x10000, scoped, tag = 'output window, operand 1']
    #allocation3 [shape = 's32[2]{0}', space=sflag, size = 0x8, scoped, tag = 'scoped memory for attention_forward.4']
    %8 = vsyncpa [#allocation3], 0
    %s9 = scalar_lea.sflag [#allocation3], 1
    %10 = vsyncpa %s9, 0
    loop: start=0, step=1, limit=4
    $region2: #{attention_forward.4} parent=1 // loop_pre_header
      _
    $region3: #{attention_forward.4} parent=1 // loop_header
      %s12 = sphi 0, %s16
      %p13 = scmp.ge.s32.totalorder %s12, 4
      %s22 = sphi 0, %s24
      %s25 = sphi 0, %s22
      %s26 = sphi 0, %s25
      %s42 = sphi 0, %s26
      %s48 = sphi 0, %s50
      %s51 = sphi 0, %s48
      %s52 = sphi 0, %s51
      %s68 = sphi 0, %s52
      %s74 = sphi 0, %s76
      %s77 = sphi 0, %s74
      %s78 = sphi 0, %s77
      %s94 = sphi 0, %s78
    $region4: #{attention_forward.4} parent=1 // loop_header_branch
      %15 = sbr.rel (%p13) target = $region8
    $region5: #{attention_forward.4} parent=1 // loop_body
      %s17 = ssub.s32 %s12, 1
      %s18 = ssub.s32 %s12, 2
      %s19 = sadd.s32 %s12, 1
      %s20 = ssub.s32 %s12, %s19
      %p21 = scmp.eq.s32.totalorder %s20, 0
      %s23 = sadd.s32 %s22, 1
      %s24 = scalar_select %p21, %s22, %s23
      %p27 = pneg %p21
      %p28 = scmp.eq.s32.totalorder %s12, 1
      %p29 = por %p27, %p28
      %p30 = scmp.ne.s32.totalorder %s22, %s25
      %p31 = scmp.eq.s32.totalorder %s12, 0
      %p32 = por %p30, %p31
      %p33 = scmp.ne.s32.totalorder %s22, %s25
      %p34 = scmp.eq.s32.totalorder %s17, 1
      %p35 = por %p33, %p34
      %p36 = scmp.ne.s32.totalorder %s25, %s26
      %p37 = scmp.eq.s32.totalorder %s17, 0
      %p38 = por %p36, %p37
      %p39 = scmp.ne.s32.totalorder %s25, %s26
      %p40 = scmp.eq.s32.totalorder %s18, 1
      %p41 = por %p39, %p40
      %p43 = scmp.ne.s32.totalorder %s26, %s42
      %p44 = scmp.eq.s32.totalorder %s18, 0
      %p45 = por %p43, %p44
      %s46 = ssub.s32 %s12, %s19
      %p47 = scmp.eq.s32.totalorder %s46, 0
      %s49 = sadd.s32 %s48, 1
      %s50 = scalar_select %p47, %s48, %s49
      %p53 = pneg %p47
      %p54 = scmp.eq.s32.totalorder %s12, 1
      %p55 = por %p53, %p54
      %p56 = scmp.ne.s32.totalorder %s48, %s51
      %p57 = scmp.eq.s32.totalorder %s12, 0
      %p58 = por %p56, %p57
      %p59 = scmp.ne.s32.totalorder %s48, %s51
      %p60 = scmp.eq.s32.totalorder %s17, 1
      %p61 = por %p59, %p60
      %p62 = scmp.ne.s32.totalorder %s51, %s52
      %p63 = scmp.eq.s32.totalorder %s17, 0
      %p64 = por %p62, %p63
      %p65 = scmp.ne.s32.totalorder %s51, %s52
      %p66 = scmp.eq.s32.totalorder %s18, 1
      %p67 = por %p65, %p66
      %p69 = scmp.ne.s32.totalorder %s52, %s68
      %p70 = scmp.eq.s32.totalorder %s18, 0
      %p71 = por %p69, %p70
      %s72 = ssub.s32 %s12, %s19
      %p73 = scmp.eq.s32.totalorder %s72, 0
      %s75 = sadd.s32 %s74, 1
      %s76 = scalar_select %p73, %s74, %s75
      %p79 = pneg %p73
      %p80 = scmp.eq.s32.totalorder %s12, 1
      %p81 = por %p79, %p80
      %p82 = scmp.ne.s32.totalorder %s74, %s77
      %p83 = scmp.eq.s32.totalorder %s12, 0
      %p84 = por %p82, %p83
      %p85 = scmp.ne.s32.totalorder %s74, %s77
      %p86 = scmp.eq.s32.totalorder %s17, 1
      %p87 = por %p85, %p86
      %p88 = scmp.ne.s32.totalorder %s77, %s78
      %p89 = scmp.eq.s32.totalorder %s17, 0
      %p90 = por %p88, %p89
      %p91 = scmp.ne.s32.totalorder %s77, %s78
      %p92 = scmp.eq.s32.totalorder %s18, 1
      %p93 = por %p91, %p92
      %p95 = scmp.ne.s32.totalorder %s78, %s94
      %p96 = scmp.eq.s32.totalorder %s18, 0
      %p97 = por %p95, %p96
      %p98 = scmp.le.s32.totalorder 1, %s12
      %p99 = scmp.lt.s32.totalorder %s12, 3
      %p100 = pnand %p98, %p99
      %p101 = pneg %p100
      // Predicated region
      $region9: #{attention_forward.4} parent=5 // pred_check
        _
      $region10: #{attention_forward.4} parent=5 // pred_check_branch
        %103 = sbr.rel (%p100) target = $region12
      $region11: #{attention_forward.4} parent=5 // pred_region
        %s104 = ssub.s32 %s12, 1
      $region12: #{attention_forward.4} parent=5 // pred_fallthru
        _
      %p105 = scmp.lt.s32.totalorder %s12, 2
      // Predicated region
      $region13: #{attention_forward.4} parent=5 // pred_check
        %p106 = pneg %p105
      $region14: #{attention_forward.4} parent=5 // pred_check_branch
        %108 = sbr.rel (%p106) target = $region16
      $region15: #{attention_forward.4} parent=5 // pred_region
        // Predicated region
        $region17: #{attention_forward.4} parent=15 // pred_check
          %p109 = pneg %p32
        $region18: #{attention_forward.4} parent=15 // pred_check_branch
          %111 = sbr.rel (%p109) target = $region20
        $region19: #{attention_forward.4} parent=15 // pred_region
          %p112 = scmp.lt.s32.totalorder %s12, 1
          %s113 = scalar_select %p112, %s12, 1
          %s114 = smul.addr %s113, 8
          %s115 = scalar_lea.vmem %s0, %s114
        $region20: #{attention_forward.4} parent=15 // pred_fallthru
          _
      $region16: #{attention_forward.4} parent=5 // pred_fallthru
        _
      %p116 = scmp.le.s32.totalorder 1, %s12
      %p117 = scmp.lt.s32.totalorder %s12, 3
      %p118 = pnand %p116, %p117
      %p119 = pneg %p118
      // Predicated region
      $region21: #{attention_forward.4} parent=5 // pred_check
        _
      $region22: #{attention_forward.4} parent=5 // pred_check_branch
        %121 = sbr.rel (%p118) target = $region24
      $region23: #{attention_forward.4} parent=5 // pred_region
        %s122 = ssub.s32 %s12, 1
        %p123 = scmp.lt.s32.totalorder %s17, 1
        %s124 = scalar_select %p123, %s17, 1
        %s125 = smul.addr %s124, 8
        %s126 = scalar_lea.vmem %s0, %s125
        %p127 = pneg %p38
        %p128 = pneg %p35
        %p129 = pneg %p64
        %p130 = pneg %p61
        %p131 = scmp.lt.s32.totalorder %s17, 1
        %s132 = scalar_select %p131, %s17, 1
        %s133 = smul.addr %s132, 8
        %s134 = scalar_lea.vmem %s1, %s133
        %p135 = pneg %p90
        %p136 = pneg %p87
        %s137 = sand.u32 %s77, 1
        %s138 = scalar_lea.sflag [#allocation3], %s137
        %s139 = sand.u32 %s77, 1
        %s140 = smul.addr %s139, 64
        %s141 = scalar_lea.vmem [#allocation2], %s140
        %p142 = scmp.lt.s32.totalorder %s17, 1
        %s143 = scalar_select %p142, %s17, 1
        %s144 = smul.addr %s143, 8
        %s145 = scalar_lea.vmem %s0, %s144
        %p146 = scmp.lt.s32.totalorder %s17, 1
        %s147 = scalar_select %p146, %s17, 1
        %s148 = smul.addr %s147, 8
        %s149 = scalar_lea.vmem %s1, %s148
        %v150 = vld [vmem:[%s145] sm:$0xff]
        %v151 = vmul.f32 %v150, 0.5
        %153 = vrot.lane.b32.xlu0 %v150, 96
        %v154 = vpop.permute.xlu0 %153
        %vm155 = vcmask 31744
        %v157 = vsel %vm155, %v151, 0
        %v159 = vsel %vm155, %v154, 0
        %161 = vmatprep.subr.mxu0 0.0
        %162 = vmatpush1.xpose.msra.mxu0 0.0
        %163 = vmatprep.subr.mxu0 0.0
        %164 = vmatpush1.xpose.msra.mxu0 0.0
        %165 = vmatprep.subr.mxu0 0.0
        %166 = vmatpush1.xpose.msra.mxu0 0.0
        %167 = vmatprep.subr.mxu0 0.0
        %168 = vmatpush1.xpose.msra.mxu0 0.0
        %169 = vmatprep.subr.mxu0 0.0
        %170 = vmatpush1.xpose.msra.mxu0 0.0
        %171 = vmatprep.subr.mxu0 0.0
        %172 = vmatpush1.xpose.msra.mxu0 0.0
        %173 = vmatprep.subr.mxu0 0.0
        %174 = vmatpush1.xpose.msra.mxu0 0.0
        %175 = vmatprep.subr.mxu0 0.0
        %176 = vmatpush1.xpose.msra.mxu0 0.0
        %177 = vmatprep.subr.mxu0 0.0
        %178 = vmatpush1.xpose.msra.mxu0 0.0
        %179 = vmatprep.subr.mxu0 0.0
        %180 = vmatpush1.xpose.msra.mxu0 0.0
        %181 = vmatprep.subr.mxu0 0.0
        %182 = vmatpush1.xpose.msra.mxu0 0.0
        %183 = vmatprep.subr.mxu0 0.0
        %184 = vmatpush1.xpose.msra.mxu0 0.0
        %185 = vmatprep.subr.mxu0 0.0
        %186 = vmatpush1.xpose.msra.mxu0 0.0
        %187 = vmatprep.subr.mxu0 0.0
        %188 = vmatpush1.xpose.msra.mxu0 0.0
        %189 = vmatprep.subr.mxu0 0.0
        %190 = vmatpush1.xpose.msra.mxu0 0.0
        %191 = vmatprep.subr.mxu0 0.0
        %192 = vmatpush1.xpose.msra.mxu0 %v159
        %193 = vmatprep.subr.mxu0 0.0
        %194 = vmatpush2.xpose.msra.mxu0 0.0
        %195 = vmatprep.subr.mxu0 0.0
        %196 = vmatpush2.xpose.msra.mxu0 0.0
        %197 = vmatprep.subr.mxu0 0.0
        %198 = vmatpush2.xpose.msra.mxu0 0.0
        %199 = vmatprep.subr.mxu0 0.0
        %200 = vmatpush2.xpose.msra.mxu0 0.0
        %201 = vmatprep.subr.mxu0 0.0
        %202 = vmatpush2.xpose.msra.mxu0 0.0
        %203 = vmatprep.subr.mxu0 0.0
        %204 = vmatpush2.xpose.msra.mxu0 0.0
        %205 = vmatprep.subr.mxu0 0.0
        %206 = vmatpush2.xpose.msra.mxu0 0.0
        %207 = vmatprep.subr.mxu0 0.0
        %208 = vmatpush2.xpose.msra.mxu0 0.0
        %209 = vmatprep.subr.mxu0 0.0
        %210 = vmatpush2.xpose.msra.mxu0 0.0
        %211 = vmatprep.subr.mxu0 0.0
        %212 = vmatpush2.xpose.msra.mxu0 0.0
        %213 = vmatprep.subr.mxu0 0.0
        %214 = vmatpush2.xpose.msra.mxu0 0.0
        %215 = vmatprep.subr.mxu0 0.0
        %216 = vmatpush2.xpose.msra.mxu0 0.0
        %217 = vmatprep.subr.mxu0 0.0
        %218 = vmatpush2.xpose.msra.mxu0 0.0
        %219 = vmatprep.subr.mxu0 0.0
        %220 = vmatpush2.xpose.msra.mxu0 0.0
        %221 = vmatprep.subr.mxu0 0.0
        %222 = vmatpush2.xpose.msra.mxu0 0.0
        %223 = vmatprep.subr.mxu0 0.0
        %224 = vmatpush2.xpose.msra.mxu0 0.0
        %225 = vmatprep.mubr.f32.mxu0 0.0
        %226 = vmatmul.mubr.f32.gmra.mxu0 %v157
        %v227 = vpop.f32.mrf.mxu0
        %v228 = vadd.f32 0.0, %v227
        %v229 = vpop.f32.mrf.mxu0
        %230 = vdwg.mxu0
        %vm231 = vcmask 64512
        %v232 = vsel %vm231, %v228, -inf
        %233 = vmax.xlane.f32.xlu0 %v232
        %v234 = vpop.xlane.xlu0 %233
        %v235 = vsub.f32 %v228, %v234
        %v236 = vmul.f32 %v235, 1.442695
        %v237 = vpow.pop %v236
        %v238 = vsel %vm231, %v237, 0.0
        %239 = vadd.xlane.f32.xlu0 %v238
        %v240 = vpop.xlane.xlu0 %239
        %v241 = vrcp.pop %v240
        %v242 = vmul.f32 %v237, %v241
        %243 = vst.msk [vmem:[%s141] sm:$0xff] %vm231, %v242
        %244 = vrot.lane.b32.xlu0 %v150, 64
        %v245 = vpop.permute.xlu0 %244
        %v248 = vsel %vm231, %v242, 0
        %250 = vmatprep.subr.mxu0 0.0
        %251 = vmatpush1.msra.mxu0 0.0
        %252 = vmatprep.subr.mxu0 0.0
        %253 = vmatpush1.msra.mxu0 0.0
        %254 = vmatprep.subr.mxu0 0.0
        %255 = vmatpush1.msra.mxu0 0.0
        %256 = vmatprep.subr.mxu0 0.0
        %257 = vmatpush1.msra.mxu0 0.0
        %258 = vmatprep.subr.mxu0 0.0
        %259 = vmatpush1.msra.mxu0 0.0
        %260 = vmatprep.subr.mxu0 0.0
        %261 = vmatpush1.msra.mxu0 0.0
        %262 = vmatprep.subr.mxu0 0.0
        %263 = vmatpush1.msra.mxu0 0.0
        %264 = vmatprep.subr.mxu0 0.0
        %265 = vmatpush1.msra.mxu0 0.0
        %266 = vmatprep.subr.mxu0 0.0
        %267 = vmatpush1.msra.mxu0 0.0
        %268 = vmatprep.subr.mxu0 0.0
        %269 = vmatpush1.msra.mxu0 0.0
        %270 = vmatprep.subr.mxu0 0.0
        %271 = vmatpush1.msra.mxu0 0.0
        %272 = vmatprep.subr.mxu0 0.0
        %273 = vmatpush1.msra.mxu0 0.0
        %274 = vmatprep.subr.mxu0 0.0
        %275 = vmatpush1.msra.mxu0 0.0
        %276 = vmatprep.subr.mxu0 0.0
        %277 = vmatpush1.msra.mxu0 0.0
        %278 = vmatprep.subr.mxu0 0.0
        %279 = vmatpush1.msra.mxu0 0.0
        %280 = vmatprep.subr.mxu0 0.0
        %281 = vmatpush1.msra.mxu0 %v245
        %282 = vmatprep.subr.mxu0 0.0
        %283 = vmatpush2.msra.mxu0 0.0
        %284 = vmatprep.subr.mxu0 0.0
        %285 = vmatpush2.msra.mxu0 0.0
        %286 = vmatprep.subr.mxu0 0.0
        %287 = vmatpush2.msra.mxu0 0.0
        %288 = vmatprep.subr.mxu0 0.0
        %289 = vmatpush2.msra.mxu0 0.0
        %290 = vmatprep.subr.mxu0 0.0
        %291 = vmatpush2.msra.mxu0 0.0
        %292 = vmatprep.subr.mxu0 0.0
        %293 = vmatpush2.msra.mxu0 0.0
        %294 = vmatprep.subr.mxu0 0.0
        %295 = vmatpush2.msra.mxu0 0.0
        %296 = vmatprep.subr.mxu0 0.0
        %297 = vmatpush2.msra.mxu0 0.0
        %298 = vmatprep.subr.mxu0 0.0
        %299 = vmatpush2.msra.mxu0 0.0
        %300 = vmatprep.subr.mxu0 0.0
        %301 = vmatpush2.msra.mxu0 0.0
        %302 = vmatprep.subr.mxu0 0.0
        %303 = vmatpush2.msra.mxu0 0.0
        %304 = vmatprep.subr.mxu0 0.0
        %305 = vmatpush2.msra.mxu0 0.0
        %306 = vmatprep.subr.mxu0 0.0
        %307 = vmatpush2.msra.mxu0 0.0
        %308 = vmatprep.subr.mxu0 0.0
        %309 = vmatpush2.msra.mxu0 0.0
        %310 = vmatprep.subr.mxu0 0.0
        %311 = vmatpush2.msra.mxu0 0.0
        %312 = vmatprep.subr.mxu0 0.0
        %313 = vmatpush2.msra.mxu0 0.0
        %314 = vmatprep.mubr.f32.mxu0 0.0
        %315 = vmatmul.mubr.f32.gmra.mxu0 %v248
        %v316 = vpop.f32.mrf.mxu0
        %v317 = vadd.f32 0.0, %v316
        %v318 = vpop.f32.mrf.mxu0
        %319 = vdwg.mxu0
        %320 = vst.msk [vmem:[%s149] sm:$0xff] %vm155, %v317
        %321 = vrot.lane.b32.xlu0 %v151, 124
        %v322 = vpop.permute.xlu0 %321
        %323 = vrot.lane.b32.xlu0 %v150, 92
        %v324 = vpop.permute.xlu0 %323
        %v325 = vsel %vm155, %v322, 0
        %v327 = vsel %vm155, %v324, 0
        %329 = vmatprep.subr.mxu0 0.0
        %330 = vmatpush1.xpose.msra.mxu0 0.0
        %331 = vmatprep.subr.mxu0 0.0
        %332 = vmatpush1.xpose.msra.mxu0 0.0
        %333 = vmatprep.subr.mxu0 0.0
        %334 = vmatpush1.xpose.msra.mxu0 0.0
        %335 = vmatprep.subr.mxu0 0.0
        %336 = vmatpush1.xpose.msra.mxu0 0.0
        %337 = vmatprep.subr.mxu0 0.0
        %338 = vmatpush1.xpose.msra.mxu0 0.0
        %339 = vmatprep.subr.mxu0 0.0
        %340 = vmatpush1.xpose.msra.mxu0 0.0
        %341 = vmatprep.subr.mxu0 0.0
        %342 = vmatpush1.xpose.msra.mxu0 0.0
        %343 = vmatprep.subr.mxu0 0.0
        %344 = vmatpush1.xpose.msra.mxu0 0.0
        %345 = vmatprep.subr.mxu0 0.0
        %346 = vmatpush1.xpose.msra.mxu0 0.0
        %347 = vmatprep.subr.mxu0 0.0
        %348 = vmatpush1.xpose.msra.mxu0 0.0
        %349 = vmatprep.subr.mxu0 0.0
        %350 = vmatpush1.xpose.msra.mxu0 0.0
        %351 = vmatprep.subr.mxu0 0.0
        %352 = vmatpush1.xpose.msra.mxu0 0.0
        %353 = vmatprep.subr.mxu0 0.0
        %354 = vmatpush1.xpose.msra.mxu0 0.0
        %355 = vmatprep.subr.mxu0 0.0
        %356 = vmatpush1.xpose.msra.mxu0 0.0
        %357 = vmatprep.subr.mxu0 0.0
        %358 = vmatpush1.xpose.msra.mxu0 0.0
        %359 = vmatprep.subr.mxu0 0.0
        %360 = vmatpush1.xpose.msra.mxu0 %v327
        %361 = vmatprep.subr.mxu0 0.0
        %362 = vmatpush2.xpose.msra.mxu0 0.0
        %363 = vmatprep.subr.mxu0 0.0
        %364 = vmatpush2.xpose.msra.mxu0 0.0
        %365 = vmatprep.subr.mxu0 0.0
        %366 = vmatpush2.xpose.msra.mxu0 0.0
        %367 = vmatprep.subr.mxu0 0.0
        %368 = vmatpush2.xpose.msra.mxu0 0.0
        %369 = vmatprep.subr.mxu0 0.0
        %370 = vmatpush2.xpose.msra.mxu0 0.0
        %371 = vmatprep.subr.mxu0 0.0
        %372 = vmatpush2.xpose.msra.mxu0 0.0
        %373 = vmatprep.subr.mxu0 0.0
        %374 = vmatpush2.xpose.msra.mxu0 0.0
        %375 = vmatprep.subr.mxu0 0.0
        %376 = vmatpush2.xpose.msra.mxu0 0.0
        %377 = vmatprep.subr.mxu0 0.0
        %378 = vmatpush2.xpose.msra.mxu0 0.0
        %379 = vmatprep.subr.mxu0 0.0
        %380 = vmatpush2.xpose.msra.mxu0 0.0
        %381 = vmatprep.subr.mxu0 0.0
        %382 = vmatpush2.xpose.msra.mxu0 0.0
        %383 = vmatprep.subr.mxu0 0.0
        %384 = vmatpush2.xpose.msra.mxu0 0.0
        %385 = vmatprep.subr.mxu0 0.0
        %386 = vmatpush2.xpose.msra.mxu0 0.0
        %387 = vmatprep.subr.mxu0 0.0
        %388 = vmatpush2.xpose.msra.mxu0 0.0
        %389 = vmatprep.subr.mxu0 0.0
        %390 = vmatpush2.xpose.msra.mxu0 0.0
        %391 = vmatprep.subr.mxu0 0.0
        %392 = vmatpush2.xpose.msra.mxu0 0.0
        %393 = vmatprep.mubr.f32.mxu0 0.0
        %394 = vmatmul.mubr.f32.gmra.mxu0 %v325
        %v395 = vpop.f32.mrf.mxu0
        %v396 = vadd.f32 0.0, %v395
        %v397 = vpop.f32.mrf.mxu0
        %398 = vdwg.mxu0
        %v399 = vsel %vm231, %v396, -inf
        %400 = vmax.xlane.f32.xlu0 %v399
        %v401 = vpop.xlane.xlu0 %400
        %v402 = vsub.f32 %v396, %v401
        %v403 = vmul.f32 %v402, 1.442695
        %v404 = vpow.pop %v403
        %v405 = vsel %vm231, %v404, 0.0
        %406 = vadd.xlane.f32.xlu0 %v405
        %v407 = vpop.xlane.xlu0 %406
        %v408 = vrcp.pop %v407
        %v409 = vmul.f32 %v404, %v408
        %s410 = scalar_lea.vmem %s141, 8 [#allocation2]
        %411 = vst.msk [vmem:[%s410] sm:$0xff] %vm231, %v409
        %412 = vrot.lane.b32.xlu0 %v150, 60
        %v413 = vpop.permute.xlu0 %412
        %v416 = vsel %vm231, %v409, 0
        %418 = vmatprep.subr.mxu0 0.0
        %419 = vmatpush1.msra.mxu0 0.0
        %420 = vmatprep.subr.mxu0 0.0
        %421 = vmatpush1.msra.mxu0 0.0
        %422 = vmatprep.subr.mxu0 0.0
        %423 = vmatpush1.msra.mxu0 0.0
        %424 = vmatprep.subr.mxu0 0.0
        %425 = vmatpush1.msra.mxu0 0.0
        %426 = vmatprep.subr.mxu0 0.0
        %427 = vmatpush1.msra.mxu0 0.0
        %428 = vmatprep.subr.mxu0 0.0
        %429 = vmatpush1.msra.mxu0 0.0
        %430 = vmatprep.subr.mxu0 0.0
        %431 = vmatpush1.msra.mxu0 0.0
        %432 = vmatprep.subr.mxu0 0.0
        %433 = vmatpush1.msra.mxu0 0.0
        %434 = vmatprep.subr.mxu0 0.0
        %435 = vmatpush1.msra.mxu0 0.0
        %436 = vmatprep.subr.mxu0 0.0
        %437 = vmatpush1.msra.mxu0 0.0
        %438 = vmatprep.subr.mxu0 0.0
        %439 = vmatpush1.msra.mxu0 0.0
        %440 = vmatprep.subr.mxu0 0.0
        %441 = vmatpush1.msra.mxu0 0.0
        %442 = vmatprep.subr.mxu0 0.0
        %443 = vmatpush1.msra.mxu0 0.0
        %444 = vmatprep.subr.mxu0 0.0
        %445 = vmatpush1.msra.mxu0 0.0
        %446 = vmatprep.subr.mxu0 0.0
        %447 = vmatpush1.msra.mxu0 0.0
        %448 = vmatprep.subr.mxu0 0.0
        %449 = vmatpush1.msra.mxu0 %v413
        %450 = vmatprep.subr.mxu0 0.0
        %451 = vmatpush2.msra.mxu0 0.0
        %452 = vmatprep.subr.mxu0 0.0
        %453 = vmatpush2.msra.mxu0 0.0
        %454 = vmatprep.subr.mxu0 0.0
        %455 = vmatpush2.msra.mxu0 0.0
        %456 = vmatprep.subr.mxu0 0.0
        %457 = vmatpush2.msra.mxu0 0.0
        %458 = vmatprep.subr.mxu0 0.0
        %459 = vmatpush2.msra.mxu0 0.0
        %460 = vmatprep.subr.mxu0 0.0
        %461 = vmatpush2.msra.mxu0 0.0
        %462 = vmatprep.subr.mxu0 0.0
        %463 = vmatpush2.msra.mxu0 0.0
        %464 = vmatprep.subr.mxu0 0.0
        %465 = vmatpush2.msra.mxu0 0.0
        %466 = vmatprep.subr.mxu0 0.0
        %467 = vmatpush2.msra.mxu0 0.0
        %468 = vmatprep.subr.mxu0 0.0
        %469 = vmatpush2.msra.mxu0 0.0
        %470 = vmatprep.subr.mxu0 0.0
        %471 = vmatpush2.msra.mxu0 0.0
        %472 = vmatprep.subr.mxu0 0.0
        %473 = vmatpush2.msra.mxu0 0.0
        %474 = vmatprep.subr.mxu0 0.0
        %475 = vmatpush2.msra.mxu0 0.0
        %476 = vmatprep.subr.mxu0 0.0
        %477 = vmatpush2.msra.mxu0 0.0
        %478 = vmatprep.subr.mxu0 0.0
        %479 = vmatpush2.msra.mxu0 0.0
        %480 = vmatprep.subr.mxu0 0.0
        %481 = vmatpush2.msra.mxu0 0.0
        %482 = vmatprep.mubr.f32.mxu0 0.0
        %483 = vmatmul.mubr.f32.gmra.mxu0 %v416
        %v484 = vpop.f32.mrf.mxu0
        %v485 = vadd.f32 0.0, %v484
        %v486 = vpop.f32.mrf.mxu0
        %487 = vdwg.mxu0
        %489 = vrot.lane.b32.xlu0 %v485, 4
        %v490 = vpop.permute.xlu0 %489
        %vm492 = vcmask 64544
        %493 = vst.msk [vmem:[%s149] sm:$0xff] %vm492, %v490
        %494 = vrot.lane.b32.xlu0 %v151, 120
        %v495 = vpop.permute.xlu0 %494
        %496 = vrot.lane.b32.xlu0 %v150, 88
        %v497 = vpop.permute.xlu0 %496
        %v498 = vsel %vm155, %v495, 0
        %v500 = vsel %vm155, %v497, 0
        %502 = vmatprep.subr.mxu0 0.0
        %503 = vmatpush1.xpose.msra.mxu0 0.0
        %504 = vmatprep.subr.mxu0 0.0
        %505 = vmatpush1.xpose.msra.mxu0 0.0
        %506 = vmatprep.subr.mxu0 0.0
        %507 = vmatpush1.xpose.msra.mxu0 0.0
        %508 = vmatprep.subr.mxu0 0.0
        %509 = vmatpush1.xpose.msra.mxu0 0.0
        %510 = vmatprep.subr.mxu0 0.0
        %511 = vmatpush1.xpose.msra.mxu0 0.0
        %512 = vmatprep.subr.mxu0 0.0
        %513 = vmatpush1.xpose.msra.mxu0 0.0
        %514 = vmatprep.subr.mxu0 0.0
        %515 = vmatpush1.xpose.msra.mxu0 0.0
        %516 = vmatprep.subr.mxu0 0.0
        %517 = vmatpush1.xpose.msra.mxu0 0.0
        %518 = vmatprep.subr.mxu0 0.0
        %519 = vmatpush1.xpose.msra.mxu0 0.0
        %520 = vmatprep.subr.mxu0 0.0
        %521 = vmatpush1.xpose.msra.mxu0 0.0
        %522 = vmatprep.subr.mxu0 0.0
        %523 = vmatpush1.xpose.msra.mxu0 0.0
        %524 = vmatprep.subr.mxu0 0.0
        %525 = vmatpush1.xpose.msra.mxu0 0.0
        %526 = vmatprep.subr.mxu0 0.0
        %527 = vmatpush1.xpose.msra.mxu0 0.0
        %528 = vmatprep.subr.mxu0 0.0
        %529 = vmatpush1.xpose.msra.mxu0 0.0
        %530 = vmatprep.subr.mxu0 0.0
        %531 = vmatpush1.xpose.msra.mxu0 0.0
        %532 = vmatprep.subr.mxu0 0.0
        %533 = vmatpush1.xpose.msra.mxu0 %v500
        %534 = vmatprep.subr.mxu0 0.0
        %535 = vmatpush2.xpose.msra.mxu0 0.0
        %536 = vmatprep.subr.mxu0 0.0
        %537 = vmatpush2.xpose.msra.mxu0 0.0
        %538 = vmatprep.subr.mxu0 0.0
        %539 = vmatpush2.xpose.msra.mxu0 0.0
        %540 = vmatprep.subr.mxu0 0.0
        %541 = vmatpush2.xpose.msra.mxu0 0.0
        %542 = vmatprep.subr.mxu0 0.0
        %543 = vmatpush2.xpose.msra.mxu0 0.0
        %544 = vmatprep.subr.mxu0 0.0
        %545 = vmatpush2.xpose.msra.mxu0 0.0
        %546 = vmatprep.subr.mxu0 0.0
        %547 = vmatpush2.xpose.msra.mxu0 0.0
        %548 = vmatprep.subr.mxu0 0.0
        %549 = vmatpush2.xpose.msra.mxu0 0.0
        %550 = vmatprep.subr.mxu0 0.0
        %551 = vmatpush2.xpose.msra.mxu0 0.0
        %552 = vmatprep.subr.mxu0 0.0
        %553 = vmatpush2.xpose.msra.mxu0 0.0
        %554 = vmatprep.subr.mxu0 0.0
        %555 = vmatpush2.xpose.msra.mxu0 0.0
        %556 = vmatprep.subr.mxu0 0.0
        %557 = vmatpush2.xpose.msra.mxu0 0.0
        %558 = vmatprep.subr.mxu0 0.0
        %559 = vmatpush2.xpose.msra.mxu0 0.0
        %560 = vmatprep.subr.mxu0 0.0
        %561 = vmatpush2.xpose.msra.mxu0 0.0
        %562 = vmatprep.subr.mxu0 0.0
        %563 = vmatpush2.xpose.msra.mxu0 0.0
        %564 = vmatprep.subr.mxu0 0.0
        %565 = vmatpush2.xpose.msra.mxu0 0.0
        %566 = vmatprep.mubr.f32.mxu0 0.0
        %567 = vmatmul.mubr.f32.gmra.mxu0 %v498
        %v568 = vpop.f32.mrf.mxu0
        %v569 = vadd.f32 0.0, %v568
        %v570 = vpop.f32.mrf.mxu0
        %571 = vdwg.mxu0
        %v572 = vsel %vm231, %v569, -inf
        %573 = vmax.xlane.f32.xlu0 %v572
        %v574 = vpop.xlane.xlu0 %573
        %v575 = vsub.f32 %v569, %v574
        %v576 = vmul.f32 %v575, 1.442695
        %v577 = vpow.pop %v576
        %v578 = vsel %vm231, %v577, 0.0
        %579 = vadd.xlane.f32.xlu0 %v578
        %v580 = vpop.xlane.xlu0 %579
        %v581 = vrcp.pop %v580
        %v582 = vmul.f32 %v577, %v581
        %s583 = scalar_lea.vmem %s141, 16 [#allocation2]
        %584 = vst.msk [vmem:[%s583] sm:$0xff] %vm231, %v582
        %585 = vrot.lane.b32.xlu0 %v150, 56
        %v586 = vpop.permute.xlu0 %585
        %v589 = vsel %vm231, %v582, 0
        %591 = vmatprep.subr.mxu0 0.0
        %592 = vmatpush1.msra.mxu0 0.0
        %593 = vmatprep.subr.mxu0 0.0
        %594 = vmatpush1.msra.mxu0 0.0
        %595 = vmatprep.subr.mxu0 0.0
        %596 = vmatpush1.msra.mxu0 0.0
        %597 = vmatprep.subr.mxu0 0.0
        %598 = vmatpush1.msra.mxu0 0.0
        %599 = vmatprep.subr.mxu0 0.0
        %600 = vmatpush1.msra.mxu0 0.0
        %601 = vmatprep.subr.mxu0 0.0
        %602 = vmatpush1.msra.mxu0 0.0
        %603 = vmatprep.subr.mxu0 0.0
        %604 = vmatpush1.msra.mxu0 0.0
        %605 = vmatprep.subr.mxu0 0.0
        %606 = vmatpush1.msra.mxu0 0.0
        %607 = vmatprep.subr.mxu0 0.0
        %608 = vmatpush1.msra.mxu0 0.0
        %609 = vmatprep.subr.mxu0 0.0
        %610 = vmatpush1.msra.mxu0 0.0
        %611 = vmatprep.subr.mxu0 0.0
        %612 = vmatpush1.msra.mxu0 0.0
        %613 = vmatprep.subr.mxu0 0.0
        %614 = vmatpush1.msra.mxu0 0.0
        %615 = vmatprep.subr.mxu0 0.0
        %616 = vmatpush1.msra.mxu0 0.0
        %617 = vmatprep.subr.mxu0 0.0
        %618 = vmatpush1.msra.mxu0 0.0
        %619 = vmatprep.subr.mxu0 0.0
        %620 = vmatpush1.msra.mxu0 0.0
        %621 = vmatprep.subr.mxu0 0.0
        %622 = vmatpush1.msra.mxu0 %v586
        %623 = vmatprep.subr.mxu0 0.0
        %624 = vmatpush2.msra.mxu0 0.0
        %625 = vmatprep.subr.mxu0 0.0
        %626 = vmatpush2.msra.mxu0 0.0
        %627 = vmatprep.subr.mxu0 0.0
        %628 = vmatpush2.msra.mxu0 0.0
        %629 = vmatprep.subr.mxu0 0.0
        %630 = vmatpush2.msra.mxu0 0.0
        %631 = vmatprep.subr.mxu0 0.0
        %632 = vmatpush2.msra.mxu0 0.0
        %633 = vmatprep.subr.mxu0 0.0
        %634 = vmatpush2.msra.mxu0 0.0
        %635 = vmatprep.subr.mxu0 0.0
        %636 = vmatpush2.msra.mxu0 0.0
        %637 = vmatprep.subr.mxu0 0.0
        %638 = vmatpush2.msra.mxu0 0.0
        %639 = vmatprep.subr.mxu0 0.0
        %640 = vmatpush2.msra.mxu0 0.0
        %641 = vmatprep.subr.mxu0 0.0
        %642 = vmatpush2.msra.mxu0 0.0
        %643 = vmatprep.subr.mxu0 0.0
        %644 = vmatpush2.msra.mxu0 0.0
        %645 = vmatprep.subr.mxu0 0.0
        %646 = vmatpush2.msra.mxu0 0.0
        %647 = vmatprep.subr.mxu0 0.0
        %648 = vmatpush2.msra.mxu0 0.0
        %649 = vmatprep.subr.mxu0 0.0
        %650 = vmatpush2.msra.mxu0 0.0
        %651 = vmatprep.subr.mxu0 0.0
        %652 = vmatpush2.msra.mxu0 0.0
        %653 = vmatprep.subr.mxu0 0.0
        %654 = vmatpush2.msra.mxu0 0.0
        %655 = vmatprep.mubr.f32.mxu0 0.0
        %656 = vmatmul.mubr.f32.gmra.mxu0 %v589
        %v657 = vpop.f32.mrf.mxu0
        %v658 = vadd.f32 0.0, %v657
        %v659 = vpop.f32.mrf.mxu0
        %660 = vdwg.mxu0
        %662 = vrot.lane.b32.xlu0 %v658, 8
        %v663 = vpop.permute.xlu0 %662
        %vm665 = vcmask 97344
        %666 = vst.msk [vmem:[%s149] sm:$0xff] %vm665, %v663
        %667 = vrot.lane.b32.xlu0 %v151, 116
        %v668 = vpop.permute.xlu0 %667
        %669 = vrot.lane.b32.xlu0 %v150, 84
        %v670 = vpop.permute.xlu0 %669
        %v671 = vsel %vm155, %v668, 0
        %v673 = vsel %vm155, %v670, 0
        %675 = vmatprep.subr.mxu0 0.0
        %676 = vmatpush1.xpose.msra.mxu0 0.0
        %677 = vmatprep.subr.mxu0 0.0
        %678 = vmatpush1.xpose.msra.mxu0 0.0
        %679 = vmatprep.subr.mxu0 0.0
        %680 = vmatpush1.xpose.msra.mxu0 0.0
        %681 = vmatprep.subr.mxu0 0.0
        %682 = vmatpush1.xpose.msra.mxu0 0.0
        %683 = vmatprep.subr.mxu0 0.0
        %684 = vmatpush1.xpose.msra.mxu0 0.0
        %685 = vmatprep.subr.mxu0 0.0
        %686 = vmatpush1.xpose.msra.mxu0 0.0
        %687 = vmatprep.subr.mxu0 0.0
        %688 = vmatpush1.xpose.msra.mxu0 0.0
        %689 = vmatprep.subr.mxu0 0.0
        %690 = vmatpush1.xpose.msra.mxu0 0.0
        %691 = vmatprep.subr.mxu0 0.0
        %692 = vmatpush1.xpose.msra.mxu0 0.0
        %693 = vmatprep.subr.mxu0 0.0
        %694 = vmatpush1.xpose.msra.mxu0 0.0
        %695 = vmatprep.subr.mxu0 0.0
        %696 = vmatpush1.xpose.msra.mxu0 0.0
        %697 = vmatprep.subr.mxu0 0.0
        %698 = vmatpush1.xpose.msra.mxu0 0.0
        %699 = vmatprep.subr.mxu0 0.0
        %700 = vmatpush1.xpose.msra.mxu0 0.0
        %701 = vmatprep.subr.mxu0 0.0
        %702 = vmatpush1.xpose.msra.mxu0 0.0
        %703 = vmatprep.subr.mxu0 0.0
        %704 = vmatpush1.xpose.msra.mxu0 0.0
        %705 = vmatprep.subr.mxu0 0.0
        %706 = vmatpush1.xpose.msra.mxu0 %v673
        %707 = vmatprep.subr.mxu0 0.0
        %708 = vmatpush2.xpose.msra.mxu0 0.0
        %709 = vmatprep.subr.mxu0 0.0
        %710 = vmatpush2.xpose.msra.mxu0 0.0
        %711 = vmatprep.subr.mxu0 0.0
        %712 = vmatpush2.xpose.msra.mxu0 0.0
        %713 = vmatprep.subr.mxu0 0.0
        %714 = vmatpush2.xpose.msra.mxu0 0.0
        %715 = vmatprep.subr.mxu0 0.0
        %716 = vmatpush2.xpose.msra.mxu0 0.0
        %717 = vmatprep.subr.mxu0 0.0
        %718 = vmatpush2.xpose.msra.mxu0 0.0
        %719 = vmatprep.subr.mxu0 0.0
        %720 = vmatpush2.xpose.msra.mxu0 0.0
        %721 = vmatprep.subr.mxu0 0.0
        %722 = vmatpush2.xpose.msra.mxu0 0.0
        %723 = vmatprep.subr.mxu0 0.0
        %724 = vmatpush2.xpose.msra.mxu0 0.0
        %725 = vmatprep.subr.mxu0 0.0
        %726 = vmatpush2.xpose.msra.mxu0 0.0
        %727 = vmatprep.subr.mxu0 0.0
        %728 = vmatpush2.xpose.msra.mxu0 0.0
        %729 = vmatprep.subr.mxu0 0.0
        %730 = vmatpush2.xpose.msra.mxu0 0.0
        %731 = vmatprep.subr.mxu0 0.0
        %732 = vmatpush2.xpose.msra.mxu0 0.0
        %733 = vmatprep.subr.mxu0 0.0
        %734 = vmatpush2.xpose.msra.mxu0 0.0
        %735 = vmatprep.subr.mxu0 0.0
        %736 = vmatpush2.xpose.msra.mxu0 0.0
        %737 = vmatprep.subr.mxu0 0.0
        %738 = vmatpush2.xpose.msra.mxu0 0.0
        %739 = vmatprep.mubr.f32.mxu0 0.0
        %740 = vmatmul.mubr.f32.gmra.mxu0 %v671
        %v741 = vpop.f32.mrf.mxu0
        %v742 = vadd.f32 0.0, %v741
        %v743 = vpop.f32.mrf.mxu0
        %744 = vdwg.mxu0
        %v745 = vsel %vm231, %v742, -inf
        %746 = vmax.xlane.f32.xlu0 %v745
        %v747 = vpop.xlane.xlu0 %746
        %v748 = vsub.f32 %v742, %v747
        %v749 = vmul.f32 %v748, 1.442695
        %v750 = vpow.pop %v749
        %v751 = vsel %vm231, %v750, 0.0
        %752 = vadd.xlane.f32.xlu0 %v751
        %v753 = vpop.xlane.xlu0 %752
        %v754 = vrcp.pop %v753
        %v755 = vmul.f32 %v750, %v754
        %s756 = scalar_lea.vmem %s141, 24 [#allocation2]
        %757 = vst.msk [vmem:[%s756] sm:$0xff] %vm231, %v755
        %758 = vrot.lane.b32.xlu0 %v150, 52
        %v759 = vpop.permute.xlu0 %758
        %v762 = vsel %vm231, %v755, 0
        %764 = vmatprep.subr.mxu0 0.0
        %765 = vmatpush1.msra.mxu0 0.0
        %766 = vmatprep.subr.mxu0 0.0
        %767 = vmatpush1.msra.mxu0 0.0
        %768 = vmatprep.subr.mxu0 0.0
        %769 = vmatpush1.msra.mxu0 0.0
        %770 = vmatprep.subr.mxu0 0.0
        %771 = vmatpush1.msra.mxu0 0.0
        %772 = vmatprep.subr.mxu0 0.0
        %773 = vmatpush1.msra.mxu0 0.0
        %774 = vmatprep.subr.mxu0 0.0
        %775 = vmatpush1.msra.mxu0 0.0
        %776 = vmatprep.subr.mxu0 0.0
        %777 = vmatpush1.msra.mxu0 0.0
        %778 = vmatprep.subr.mxu0 0.0
        %779 = vmatpush1.msra.mxu0 0.0
        %780 = vmatprep.subr.mxu0 0.0
        %781 = vmatpush1.msra.mxu0 0.0
        %782 = vmatprep.subr.mxu0 0.0
        %783 = vmatpush1.msra.mxu0 0.0
        %784 = vmatprep.subr.mxu0 0.0
        %785 = vmatpush1.msra.mxu0 0.0
        %786 = vmatprep.subr.mxu0 0.0
        %787 = vmatpush1.msra.mxu0 0.0
        %788 = vmatprep.subr.mxu0 0.0
        %789 = vmatpush1.msra.mxu0 0.0
        %790 = vmatprep.subr.mxu0 0.0
        %791 = vmatpush1.msra.mxu0 0.0
        %792 = vmatprep.subr.mxu0 0.0
        %793 = vmatpush1.msra.mxu0 0.0
        %794 = vmatprep.subr.mxu0 0.0
        %795 = vmatpush1.msra.mxu0 %v759
        %796 = vmatprep.subr.mxu0 0.0
        %797 = vmatpush2.msra.mxu0 0.0
        %798 = vmatprep.subr.mxu0 0.0
        %799 = vmatpush2.msra.mxu0 0.0
        %800 = vmatprep.subr.mxu0 0.0
        %801 = vmatpush2.msra.mxu0 0.0
        %802 = vmatprep.subr.mxu0 0.0
        %803 = vmatpush2.msra.mxu0 0.0
        %804 = vmatprep.subr.mxu0 0.0
        %805 = vmatpush2.msra.mxu0 0.0
        %806 = vmatprep.subr.mxu0 0.0
        %807 = vmatpush2.msra.mxu0 0.0
        %808 = vmatprep.subr.mxu0 0.0
        %809 = vmatpush2.msra.mxu0 0.0
        %810 = vmatprep.subr.mxu0 0.0
        %811 = vmatpush2.msra.mxu0 0.0
        %812 = vmatprep.subr.mxu0 0.0
        %813 = vmatpush2.msra.mxu0 0.0
        %814 = vmatprep.subr.mxu0 0.0
        %815 = vmatpush2.msra.mxu0 0.0
        %816 = vmatprep.subr.mxu0 0.0
        %817 = vmatpush2.msra.mxu0 0.0
        %818 = vmatprep.subr.mxu0 0.0
        %819 = vmatpush2.msra.mxu0 0.0
        %820 = vmatprep.subr.mxu0 0.0
        %821 = vmatpush2.msra.mxu0 0.0
        %822 = vmatprep.subr.mxu0 0.0
        %823 = vmatpush2.msra.mxu0 0.0
        %824 = vmatprep.subr.mxu0 0.0
        %825 = vmatpush2.msra.mxu0 0.0
        %826 = vmatprep.subr.mxu0 0.0
        %827 = vmatpush2.msra.mxu0 0.0
        %828 = vmatprep.mubr.f32.mxu0 0.0
        %829 = vmatmul.mubr.f32.gmra.mxu0 %v762
        %v830 = vpop.f32.mrf.mxu0
        %v831 = vadd.f32 0.0, %v830
        %v832 = vpop.f32.mrf.mxu0
        %833 = vdwg.mxu0
        %835 = vrot.lane.b32.xlu0 %v831, 12
        %v836 = vpop.permute.xlu0 %835
        %vm838 = vcmask 130144
        %839 = vst.msk [vmem:[%s149] sm:$0xff] %vm838, %v836
        %840 = vrot.lane.b32.xlu0 %v151, 112
        %v841 = vpop.permute.xlu0 %840
        %842 = vrot.lane.b32.xlu0 %v150, 80
        %v843 = vpop.permute.xlu0 %842
        %v844 = vsel %vm155, %v841, 0
        %v846 = vsel %vm155, %v843, 0
        %848 = vmatprep.subr.mxu0 0.0
        %849 = vmatpush1.xpose.msra.mxu0 0.0
        %850 = vmatprep.subr.mxu0 0.0
        %851 = vmatpush1.xpose.msra.mxu0 0.0
        %852 = vmatprep.subr.mxu0 0.0
        %853 = vmatpush1.xpose.msra.mxu0 0.0
        %854 = vmatprep.subr.mxu0 0.0
        %855 = vmatpush1.xpose.msra.mxu0 0.0
        %856 = vmatprep.subr.mxu0 0.0
        %857 = vmatpush1.xpose.msra.mxu0 0.0
        %858 = vmatprep.subr.mxu0 0.0
        %859 = vmatpush1.xpose.msra.mxu0 0.0
        %860 = vmatprep.subr.mxu0 0.0
        %861 = vmatpush1.xpose.msra.mxu0 0.0
        %862 = vmatprep.subr.mxu0 0.0
        %863 = vmatpush1.xpose.msra.mxu0 0.0
        %864 = vmatprep.subr.mxu0 0.0
        %865 = vmatpush1.xpose.msra.mxu0 0.0
        %866 = vmatprep.subr.mxu0 0.0
        %867 = vmatpush1.xpose.msra.mxu0 0.0
        %868 = vmatprep.subr.mxu0 0.0
        %869 = vmatpush1.xpose.msra.mxu0 0.0
        %870 = vmatprep.subr.mxu0 0.0
        %871 = vmatpush1.xpose.msra.mxu0 0.0
        %872 = vmatprep.subr.mxu0 0.0
        %873 = vmatpush1.xpose.msra.mxu0 0.0
        %874 = vmatprep.subr.mxu0 0.0
        %875 = vmatpush1.xpose.msra.mxu0 0.0
        %876 = vmatprep.subr.mxu0 0.0
        %877 = vmatpush1.xpose.msra.mxu0 0.0
        %878 = vmatprep.subr.mxu0 0.0
        %879 = vmatpush1.xpose.msra.mxu0 %v846
        %880 = vmatprep.subr.mxu0 0.0
        %881 = vmatpush2.xpose.msra.mxu0 0.0
        %882 = vmatprep.subr.mxu0 0.0
        %883 = vmatpush2.xpose.msra.mxu0 0.0
        %884 = vmatprep.subr.mxu0 0.0
        %885 = vmatpush2.xpose.msra.mxu0 0.0
        %886 = vmatprep.subr.mxu0 0.0
        %887 = vmatpush2.xpose.msra.mxu0 0.0
        %888 = vmatprep.subr.mxu0 0.0
        %889 = vmatpush2.xpose.msra.mxu0 0.0
        %890 = vmatprep.subr.mxu0 0.0
        %891 = vmatpush2.xpose.msra.mxu0 0.0
        %892 = vmatprep.subr.mxu0 0.0
        %893 = vmatpush2.xpose.msra.mxu0 0.0
        %894 = vmatprep.subr.mxu0 0.0
        %895 = vmatpush2.xpose.msra.mxu0 0.0
        %896 = vmatprep.subr.mxu0 0.0
        %897 = vmatpush2.xpose.msra.mxu0 0.0
        %898 = vmatprep.subr.mxu0 0.0
        %899 = vmatpush2.xpose.msra.mxu0 0.0
        %900 = vmatprep.subr.mxu0 0.0
        %901 = vmatpush2.xpose.msra.mxu0 0.0
        %902 = vmatprep.subr.mxu0 0.0
        %903 = vmatpush2.xpose.msra.mxu0 0.0
        %904 = vmatprep.subr.mxu0 0.0
        %905 = vmatpush2.xpose.msra.mxu0 0.0
        %906 = vmatprep.subr.mxu0 0.0
        %907 = vmatpush2.xpose.msra.mxu0 0.0
        %908 = vmatprep.subr.mxu0 0.0
        %909 = vmatpush2.xpose.msra.mxu0 0.0
        %910 = vmatprep.subr.mxu0 0.0
        %911 = vmatpush2.xpose.msra.mxu0 0.0
        %912 = vmatprep.mubr.f32.mxu0 0.0
        %913 = vmatmul.mubr.f32.gmra.mxu0 %v844
        %v914 = vpop.f32.mrf.mxu0
        %v915 = vadd.f32 0.0, %v914
        %v916 = vpop.f32.mrf.mxu0
        %917 = vdwg.mxu0
        %v918 = vsel %vm231, %v915, -inf
        %919 = vmax.xlane.f32.xlu0 %v918
        %v920 = vpop.xlane.xlu0 %919
        %v921 = vsub.f32 %v915, %v920
        %v922 = vmul.f32 %v921, 1.442695
        %v923 = vpow.pop %v922
        %v924 = vsel %vm231, %v923, 0.0
        %925 = vadd.xlane.f32.xlu0 %v924
        %v926 = vpop.xlane.xlu0 %925
        %v927 = vrcp.pop %v926
        %v928 = vmul.f32 %v923, %v927
        %s929 = scalar_lea.vmem %s141, 32 [#allocation2]
        %930 = vst.msk [vmem:[%s929] sm:$0xff] %vm231, %v928
        %931 = vrot.lane.b32.xlu0 %v150, 48
        %v932 = vpop.permute.xlu0 %931
        %v935 = vsel %vm231, %v928, 0
        %937 = vmatprep.subr.mxu0 0.0
        %938 = vmatpush1.msra.mxu0 0.0
        %939 = vmatprep.subr.mxu0 0.0
        %940 = vmatpush1.msra.mxu0 0.0
        %941 = vmatprep.subr.mxu0 0.0
        %942 = vmatpush1.msra.mxu0 0.0
        %943 = vmatprep.subr.mxu0 0.0
        %944 = vmatpush1.msra.mxu0 0.0
        %945 = vmatprep.subr.mxu0 0.0
        %946 = vmatpush1.msra.mxu0 0.0
        %947 = vmatprep.subr.mxu0 0.0
        %948 = vmatpush1.msra.mxu0 0.0
        %949 = vmatprep.subr.mxu0 0.0
        %950 = vmatpush1.msra.mxu0 0.0
        %951 = vmatprep.subr.mxu0 0.0
        %952 = vmatpush1.msra.mxu0 0.0
        %953 = vmatprep.subr.mxu0 0.0
        %954 = vmatpush1.msra.mxu0 0.0
        %955 = vmatprep.subr.mxu0 0.0
        %956 = vmatpush1.msra.mxu0 0.0
        %957 = vmatprep.subr.mxu0 0.0
        %958 = vmatpush1.msra.mxu0 0.0
        %959 = vmatprep.subr.mxu0 0.0
        %960 = vmatpush1.msra.mxu0 0.0
        %961 = vmatprep.subr.mxu0 0.0
        %962 = vmatpush1.msra.mxu0 0.0
        %963 = vmatprep.subr.mxu0 0.0
        %964 = vmatpush1.msra.mxu0 0.0
        %965 = vmatprep.subr.mxu0 0.0
        %966 = vmatpush1.msra.mxu0 0.0
        %967 = vmatprep.subr.mxu0 0.0
        %968 = vmatpush1.msra.mxu0 %v932
        %969 = vmatprep.subr.mxu0 0.0
        %970 = vmatpush2.msra.mxu0 0.0
        %971 = vmatprep.subr.mxu0 0.0
        %972 = vmatpush2.msra.mxu0 0.0
        %973 = vmatprep.subr.mxu0 0.0
        %974 = vmatpush2.msra.mxu0 0.0
        %975 = vmatprep.subr.mxu0 0.0
        %976 = vmatpush2.msra.mxu0 0.0
        %977 = vmatprep.subr.mxu0 0.0
        %978 = vmatpush2.msra.mxu0 0.0
        %979 = vmatprep.subr.mxu0 0.0
        %980 = vmatpush2.msra.mxu0 0.0
        %981 = vmatprep.subr.mxu0 0.0
        %982 = vmatpush2.msra.mxu0 0.0
        %983 = vmatprep.subr.mxu0 0.0
        %984 = vmatpush2.msra.mxu0 0.0
        %985 = vmatprep.subr.mxu0 0.0
        %986 = vmatpush2.msra.mxu0 0.0
        %987 = vmatprep.subr.mxu0 0.0
        %988 = vmatpush2.msra.mxu0 0.0
        %989 = vmatprep.subr.mxu0 0.0
        %990 = vmatpush2.msra.mxu0 0.0
        %991 = vmatprep.subr.mxu0 0.0
        %992 = vmatpush2.msra.mxu0 0.0
        %993 = vmatprep.subr.mxu0 0.0
        %994 = vmatpush2.msra.mxu0 0.0
        %995 = vmatprep.subr.mxu0 0.0
        %996 = vmatpush2.msra.mxu0 0.0
        %997 = vmatprep.subr.mxu0 0.0
        %998 = vmatpush2.msra.mxu0 0.0
        %999 = vmatprep.subr.mxu0 0.0
        %1000 = vmatpush2.msra.mxu0 0.0
        %1001 = vmatprep.mubr.f32.mxu0 0.0
        %1002 = vmatmul.mubr.f32.gmra.mxu0 %v935
        %v1003 = vpop.f32.mrf.mxu0
        %v1004 = vadd.f32 0.0, %v1003
        %v1005 = vpop.f32.mrf.mxu0
        %1006 = vdwg.mxu0
        %1008 = vrot.lane.b32.xlu0 %v1004, 16
        %v1009 = vpop.permute.xlu0 %1008
        %vm1011 = vcmask 162944
        %1012 = vst.msk [vmem:[%s149] sm:$0xff] %vm1011, %v1009
        %1013 = vrot.lane.b32.xlu0 %v151, 108
        %v1014 = vpop.permute.xlu0 %1013
        %1015 = vrot.lane.b32.xlu0 %v150, 76
        %v1016 = vpop.permute.xlu0 %1015
        %v1017 = vsel %vm155, %v1014, 0
        %v1019 = vsel %vm155, %v1016, 0
        %1021 = vmatprep.subr.mxu0 0.0
        %1022 = vmatpush1.xpose.msra.mxu0 0.0
        %1023 = vmatprep.subr.mxu0 0.0
        %1024 = vmatpush1.xpose.msra.mxu0 0.0
        %1025 = vmatprep.subr.mxu0 0.0
        %1026 = vmatpush1.xpose.msra.mxu0 0.0
        %1027 = vmatprep.subr.mxu0 0.0
        %1028 = vmatpush1.xpose.msra.mxu0 0.0
        %1029 = vmatprep.subr.mxu0 0.0
        %1030 = vmatpush1.xpose.msra.mxu0 0.0
        %1031 = vmatprep.subr.mxu0 0.0
        %1032 = vmatpush1.xpose.msra.mxu0 0.0
        %1033 = vmatprep.subr.mxu0 0.0
        %1034 = vmatpush1.xpose.msra.mxu0 0.0
        %1035 = vmatprep.subr.mxu0 0.0
        %1036 = vmatpush1.xpose.msra.mxu0 0.0
        %1037 = vmatprep.subr.mxu0 0.0
        %1038 = vmatpush1.xpose.msra.mxu0 0.0
        %1039 = vmatprep.subr.mxu0 0.0
        %1040 = vmatpush1.xpose.msra.mxu0 0.0
        %1041 = vmatprep.subr.mxu0 0.0
        %1042 = vmatpush1.xpose.msra.mxu0 0.0
        %1043 = vmatprep.subr.mxu0 0.0
        %1044 = vmatpush1.xpose.msra.mxu0 0.0
        %1045 = vmatprep.subr.mxu0 0.0
        %1046 = vmatpush1.xpose.msra.mxu0 0.0
        %1047 = vmatprep.subr.mxu0 0.0
        %1048 = vmatpush1.xpose.msra.mxu0 0.0
        %1049 = vmatprep.subr.mxu0 0.0
        %1050 = vmatpush1.xpose.msra.mxu0 0.0
        %1051 = vmatprep.subr.mxu0 0.0
        %1052 = vmatpush1.xpose.msra.mxu0 %v1019
        %1053 = vmatprep.subr.mxu0 0.0
        %1054 = vmatpush2.xpose.msra.mxu0 0.0
        %1055 = vmatprep.subr.mxu0 0.0
        %1056 = vmatpush2.xpose.msra.mxu0 0.0
        %1057 = vmatprep.subr.mxu0 0.0
        %1058 = vmatpush2.xpose.msra.mxu0 0.0
        %1059 = vmatprep.subr.mxu0 0.0
        %1060 = vmatpush2.xpose.msra.mxu0 0.0
        %1061 = vmatprep.subr.mxu0 0.0
        %1062 = vmatpush2.xpose.msra.mxu0 0.0
        %1063 = vmatprep.subr.mxu0 0.0
        %1064 = vmatpush2.xpose.msra.mxu0 0.0
        %1065 = vmatprep.subr.mxu0 0.0
        %1066 = vmatpush2.xpose.msra.mxu0 0.0
        %1067 = vmatprep.subr.mxu0 0.0
        %1068 = vmatpush2.xpose.msra.mxu0 0.0
        %1069 = vmatprep.subr.mxu0 0.0
        %1070 = vmatpush2.xpose.msra.mxu0 0.0
        %1071 = vmatprep.subr.mxu0 0.0
        %1072 = vmatpush2.xpose.msra.mxu0 0.0
        %1073 = vmatprep.subr.mxu0 0.0
        %1074 = vmatpush2.xpose.msra.mxu0 0.0
        %1075 = vmatprep.subr.mxu0 0.0
        %1076 = vmatpush2.xpose.msra.mxu0 0.0
        %1077 = vmatprep.subr.mxu0 0.0
        %1078 = vmatpush2.xpose.msra.mxu0 0.0
        %1079 = vmatprep.subr.mxu0 0.0
        %1080 = vmatpush2.xpose.msra.mxu0 0.0
        %1081 = vmatprep.subr.mxu0 0.0
        %1082 = vmatpush2.xpose.msra.mxu0 0.0
        %1083 = vmatprep.subr.mxu0 0.0
        %1084 = vmatpush2.xpose.msra.mxu0 0.0
        %1085 = vmatprep.mubr.f32.mxu0 0.0
        %1086 = vmatmul.mubr.f32.gmra.mxu0 %v1017
        %v1087 = vpop.f32.mrf.mxu0
        %v1088 = vadd.f32 0.0, %v1087
        %v1089 = vpop.f32.mrf.mxu0
        %1090 = vdwg.mxu0
        %v1091 = vsel %vm231, %v1088, -inf
        %1092 = vmax.xlane.f32.xlu0 %v1091
        %v1093 = vpop.xlane.xlu0 %1092
        %v1094 = vsub.f32 %v1088, %v1093
        %v1095 = vmul.f32 %v1094, 1.442695
        %v1096 = vpow.pop %v1095
        %v1097 = vsel %vm231, %v1096, 0.0
        %1098 = vadd.xlane.f32.xlu0 %v1097
        %v1099 = vpop.xlane.xlu0 %1098
        %v1100 = vrcp.pop %v1099
        %v1101 = vmul.f32 %v1096, %v1100
        %s1102 = scalar_lea.vmem %s141, 40 [#allocation2]
        %1103 = vst.msk [vmem:[%s1102] sm:$0xff] %vm231, %v1101
        %1104 = vrot.lane.b32.xlu0 %v150, 44
        %v1105 = vpop.permute.xlu0 %1104
        %v1108 = vsel %vm231, %v1101, 0
        %1110 = vmatprep.subr.mxu0 0.0
        %1111 = vmatpush1.msra.mxu0 0.0
        %1112 = vmatprep.subr.mxu0 0.0
        %1113 = vmatpush1.msra.mxu0 0.0
        %1114 = vmatprep.subr.mxu0 0.0
        %1115 = vmatpush1.msra.mxu0 0.0
        %1116 = vmatprep.subr.mxu0 0.0
        %1117 = vmatpush1.msra.mxu0 0.0
        %1118 = vmatprep.subr.mxu0 0.0
        %1119 = vmatpush1.msra.mxu0 0.0
        %1120 = vmatprep.subr.mxu0 0.0
        %1121 = vmatpush1.msra.mxu0 0.0
        %1122 = vmatprep.subr.mxu0 0.0
        %1123 = vmatpush1.msra.mxu0 0.0
        %1124 = vmatprep.subr.mxu0 0.0
        %1125 = vmatpush1.msra.mxu0 0.0
        %1126 = vmatprep.subr.mxu0 0.0
        %1127 = vmatpush1.msra.mxu0 0.0
        %1128 = vmatprep.subr.mxu0 0.0
        %1129 = vmatpush1.msra.mxu0 0.0
        %1130 = vmatprep.subr.mxu0 0.0
        %1131 = vmatpush1.msra.mxu0 0.0
        %1132 = vmatprep.subr.mxu0 0.0
        %1133 = vmatpush1.msra.mxu0 0.0
        %1134 = vmatprep.subr.mxu0 0.0
        %1135 = vmatpush1.msra.mxu0 0.0
        %1136 = vmatprep.subr.mxu0 0.0
        %1137 = vmatpush1.msra.mxu0 0.0
        %1138 = vmatprep.subr.mxu0 0.0
        %1139 = vmatpush1.msra.mxu0 0.0
        %1140 = vmatprep.subr.mxu0 0.0
        %1141 = vmatpush1.msra.mxu0 %v1105
        %1142 = vmatprep.subr.mxu0 0.0
        %1143 = vmatpush2.msra.mxu0 0.0
        %1144 = vmatprep.subr.mxu0 0.0
        %1145 = vmatpush2.msra.mxu0 0.0
        %1146 = vmatprep.subr.mxu0 0.0
        %1147 = vmatpush2.msra.mxu0 0.0
        %1148 = vmatprep.subr.mxu0 0.0
        %1149 = vmatpush2.msra.mxu0 0.0
        %1150 = vmatprep.subr.mxu0 0.0
        %1151 = vmatpush2.msra.mxu0 0.0
        %1152 = vmatprep.subr.mxu0 0.0
        %1153 = vmatpush2.msra.mxu0 0.0
        %1154 = vmatprep.subr.mxu0 0.0
        %1155 = vmatpush2.msra.mxu0 0.0
        %1156 = vmatprep.subr.mxu0 0.0
        %1157 = vmatpush2.msra.mxu0 0.0
        %1158 = vmatprep.subr.mxu0 0.0
        %1159 = vmatpush2.msra.mxu0 0.0
        %1160 = vmatprep.subr.mxu0 0.0
        %1161 = vmatpush2.msra.mxu0 0.0
        %1162 = vmatprep.subr.mxu0 0.0
        %1163 = vmatpush2.msra.mxu0 0.0
        %1164 = vmatprep.subr.mxu0 0.0
        %1165 = vmatpush2.msra.mxu0 0.0
        %1166 = vmatprep.subr.mxu0 0.0
        %1167 = vmatpush2.msra.mxu0 0.0
        %1168 = vmatprep.subr.mxu0 0.0
        %1169 = vmatpush2.msra.mxu0 0.0
        %1170 = vmatprep.subr.mxu0 0.0
        %1171 = vmatpush2.msra.mxu0 0.0
        %1172 = vmatprep.subr.mxu0 0.0
        %1173 = vmatpush2.msra.mxu0 0.0
        %1174 = vmatprep.mubr.f32.mxu0 0.0
        %1175 = vmatmul.mubr.f32.gmra.mxu0 %v1108
        %v1176 = vpop.f32.mrf.mxu0
        %v1177 = vadd.f32 0.0, %v1176
        %v1178 = vpop.f32.mrf.mxu0
        %1179 = vdwg.mxu0
        %1181 = vrot.lane.b32.xlu0 %v1177, 20
        %v1182 = vpop.permute.xlu0 %1181
        %vm1184 = vcmask 195744
        %1185 = vst.msk [vmem:[%s149] sm:$0xff] %vm1184, %v1182
        %1186 = vrot.lane.b32.xlu0 %v151, 104
        %v1187 = vpop.permute.xlu0 %1186
        %1188 = vrot.lane.b32.xlu0 %v150, 72
        %v1189 = vpop.permute.xlu0 %1188
        %v1190 = vsel %vm155, %v1187, 0
        %v1192 = vsel %vm155, %v1189, 0
        %1194 = vmatprep.subr.mxu0 0.0
        %1195 = vmatpush1.xpose.msra.mxu0 0.0
        %1196 = vmatprep.subr.mxu0 0.0
        %1197 = vmatpush1.xpose.msra.mxu0 0.0
        %1198 = vmatprep.subr.mxu0 0.0
        %1199 = vmatpush1.xpose.msra.mxu0 0.0
        %1200 = vmatprep.subr.mxu0 0.0
        %1201 = vmatpush1.xpose.msra.mxu0 0.0
        %1202 = vmatprep.subr.mxu0 0.0
        %1203 = vmatpush1.xpose.msra.mxu0 0.0
        %1204 = vmatprep.subr.mxu0 0.0
        %1205 = vmatpush1.xpose.msra.mxu0 0.0
        %1206 = vmatprep.subr.mxu0 0.0
        %1207 = vmatpush1.xpose.msra.mxu0 0.0
        %1208 = vmatprep.subr.mxu0 0.0
        %1209 = vmatpush1.xpose.msra.mxu0 0.0
        %1210 = vmatprep.subr.mxu0 0.0
        %1211 = vmatpush1.xpose.msra.mxu0 0.0
        %1212 = vmatprep.subr.mxu0 0.0
        %1213 = vmatpush1.xpose.msra.mxu0 0.0
        %1214 = vmatprep.subr.mxu0 0.0
        %1215 = vmatpush1.xpose.msra.mxu0 0.0
        %1216 = vmatprep.subr.mxu0 0.0
        %1217 = vmatpush1.xpose.msra.mxu0 0.0
        %1218 = vmatprep.subr.mxu0 0.0
        %1219 = vmatpush1.xpose.msra.mxu0 0.0
        %1220 = vmatprep.subr.mxu0 0.0
        %1221 = vmatpush1.xpose.msra.mxu0 0.0
        %1222 = vmatprep.subr.mxu0 0.0
        %1223 = vmatpush1.xpose.msra.mxu0 0.0
        %1224 = vmatprep.subr.mxu0 0.0
        %1225 = vmatpush1.xpose.msra.mxu0 %v1192
        %1226 = vmatprep.subr.mxu0 0.0
        %1227 = vmatpush2.xpose.msra.mxu0 0.0
        %1228 = vmatprep.subr.mxu0 0.0
        %1229 = vmatpush2.xpose.msra.mxu0 0.0
        %1230 = vmatprep.subr.mxu0 0.0
        %1231 = vmatpush2.xpose.msra.mxu0 0.0
        %1232 = vmatprep.subr.mxu0 0.0
        %1233 = vmatpush2.xpose.msra.mxu0 0.0
        %1234 = vmatprep.subr.mxu0 0.0
        %1235 = vmatpush2.xpose.msra.mxu0 0.0
        %1236 = vmatprep.subr.mxu0 0.0
        %1237 = vmatpush2.xpose.msra.mxu0 0.0
        %1238 = vmatprep.subr.mxu0 0.0
        %1239 = vmatpush2.xpose.msra.mxu0 0.0
        %1240 = vmatprep.subr.mxu0 0.0
        %1241 = vmatpush2.xpose.msra.mxu0 0.0
        %1242 = vmatprep.subr.mxu0 0.0
        %1243 = vmatpush2.xpose.msra.mxu0 0.0
        %1244 = vmatprep.subr.mxu0 0.0
        %1245 = vmatpush2.xpose.msra.mxu0 0.0
        %1246 = vmatprep.subr.mxu0 0.0
        %1247 = vmatpush2.xpose.msra.mxu0 0.0
        %1248 = vmatprep.subr.mxu0 0.0
        %1249 = vmatpush2.xpose.msra.mxu0 0.0
        %1250 = vmatprep.subr.mxu0 0.0
        %1251 = vmatpush2.xpose.msra.mxu0 0.0
        %1252 = vmatprep.subr.mxu0 0.0
        %1253 = vmatpush2.xpose.msra.mxu0 0.0
        %1254 = vmatprep.subr.mxu0 0.0
        %1255 = vmatpush2.xpose.msra.mxu0 0.0
        %1256 = vmatprep.subr.mxu0 0.0
        %1257 = vmatpush2.xpose.msra.mxu0 0.0
        %1258 = vmatprep.mubr.f32.mxu0 0.0
        %1259 = vmatmul.mubr.f32.gmra.mxu0 %v1190
        %v1260 = vpop.f32.mrf.mxu0
        %v1261 = vadd.f32 0.0, %v1260
        %v1262 = vpop.f32.mrf.mxu0
        %1263 = vdwg.mxu0
        %v1264 = vsel %vm231, %v1261, -inf
        %1265 = vmax.xlane.f32.xlu0 %v1264
        %v1266 = vpop.xlane.xlu0 %1265
        %v1267 = vsub.f32 %v1261, %v1266
        %v1268 = vmul.f32 %v1267, 1.442695
        %v1269 = vpow.pop %v1268
        %v1270 = vsel %vm231, %v1269, 0.0
        %1271 = vadd.xlane.f32.xlu0 %v1270
        %v1272 = vpop.xlane.xlu0 %1271
        %v1273 = vrcp.pop %v1272
        %v1274 = vmul.f32 %v1269, %v1273
        %s1275 = scalar_lea.vmem %s141, 48 [#allocation2]
        %1276 = vst.msk [vmem:[%s1275] sm:$0xff] %vm231, %v1274
        %1277 = vrot.lane.b32.xlu0 %v150, 40
        %v1278 = vpop.permute.xlu0 %1277
        %v1281 = vsel %vm231, %v1274, 0
        %1283 = vmatprep.subr.mxu0 0.0
        %1284 = vmatpush1.msra.mxu0 0.0
        %1285 = vmatprep.subr.mxu0 0.0
        %1286 = vmatpush1.msra.mxu0 0.0
        %1287 = vmatprep.subr.mxu0 0.0
        %1288 = vmatpush1.msra.mxu0 0.0
        %1289 = vmatprep.subr.mxu0 0.0
        %1290 = vmatpush1.msra.mxu0 0.0
        %1291 = vmatprep.subr.mxu0 0.0
        %1292 = vmatpush1.msra.mxu0 0.0
        %1293 = vmatprep.subr.mxu0 0.0
        %1294 = vmatpush1.msra.mxu0 0.0
        %1295 = vmatprep.subr.mxu0 0.0
        %1296 = vmatpush1.msra.mxu0 0.0
        %1297 = vmatprep.subr.mxu0 0.0
        %1298 = vmatpush1.msra.mxu0 0.0
        %1299 = vmatprep.subr.mxu0 0.0
        %1300 = vmatpush1.msra.mxu0 0.0
        %1301 = vmatprep.subr.mxu0 0.0
        %1302 = vmatpush1.msra.mxu0 0.0
        %1303 = vmatprep.subr.mxu0 0.0
        %1304 = vmatpush1.msra.mxu0 0.0
        %1305 = vmatprep.subr.mxu0 0.0
        %1306 = vmatpush1.msra.mxu0 0.0
        %1307 = vmatprep.subr.mxu0 0.0
        %1308 = vmatpush1.msra.mxu0 0.0
        %1309 = vmatprep.subr.mxu0 0.0
        %1310 = vmatpush1.msra.mxu0 0.0
        %1311 = vmatprep.subr.mxu0 0.0
        %1312 = vmatpush1.msra.mxu0 0.0
        %1313 = vmatprep.subr.mxu0 0.0
        %1314 = vmatpush1.msra.mxu0 %v1278
        %1315 = vmatprep.subr.mxu0 0.0
        %1316 = vmatpush2.msra.mxu0 0.0
        %1317 = vmatprep.subr.mxu0 0.0
        %1318 = vmatpush2.msra.mxu0 0.0
        %1319 = vmatprep.subr.mxu0 0.0
        %1320 = vmatpush2.msra.mxu0 0.0
        %1321 = vmatprep.subr.mxu0 0.0
        %1322 = vmatpush2.msra.mxu0 0.0
        %1323 = vmatprep.subr.mxu0 0.0
        %1324 = vmatpush2.msra.mxu0 0.0
        %1325 = vmatprep.subr.mxu0 0.0
        %1326 = vmatpush2.msra.mxu0 0.0
        %1327 = vmatprep.subr.mxu0 0.0
        %1328 = vmatpush2.msra.mxu0 0.0
        %1329 = vmatprep.subr.mxu0 0.0
        %1330 = vmatpush2.msra.mxu0 0.0
        %1331 = vmatprep.subr.mxu0 0.0
        %1332 = vmatpush2.msra.mxu0 0.0
        %1333 = vmatprep.subr.mxu0 0.0
        %1334 = vmatpush2.msra.mxu0 0.0
        %1335 = vmatprep.subr.mxu0 0.0
        %1336 = vmatpush2.msra.mxu0 0.0
        %1337 = vmatprep.subr.mxu0 0.0
        %1338 = vmatpush2.msra.mxu0 0.0
        %1339 = vmatprep.subr.mxu0 0.0
        %1340 = vmatpush2.msra.mxu0 0.0
        %1341 = vmatprep.subr.mxu0 0.0
        %1342 = vmatpush2.msra.mxu0 0.0
        %1343 = vmatprep.subr.mxu0 0.0
        %1344 = vmatpush2.msra.mxu0 0.0
        %1345 = vmatprep.subr.mxu0 0.0
        %1346 = vmatpush2.msra.mxu0 0.0
        %1347 = vmatprep.mubr.f32.mxu0 0.0
        %1348 = vmatmul.mubr.f32.gmra.mxu0 %v1281
        %v1349 = vpop.f32.mrf.mxu0
        %v1350 = vadd.f32 0.0, %v1349
        %v1351 = vpop.f32.mrf.mxu0
        %1352 = vdwg.mxu0
        %1354 = vrot.lane.b32.xlu0 %v1350, 24
        %v1355 = vpop.permute.xlu0 %1354
        %vm1357 = vcmask 228544
        %1358 = vst.msk [vmem:[%s149] sm:$0xff] %vm1357, %v1355
        %1359 = vrot.lane.b32.xlu0 %v151, 100
        %v1360 = vpop.permute.xlu0 %1359
        %1361 = vrot.lane.b32.xlu0 %v150, 68
        %v1362 = vpop.permute.xlu0 %1361
        %v1363 = vsel %vm155, %v1360, 0
        %v1365 = vsel %vm155, %v1362, 0
        %1367 = vmatprep.subr.mxu0 0.0
        %1368 = vmatpush1.xpose.msra.mxu0 0.0
        %1369 = vmatprep.subr.mxu0 0.0
        %1370 = vmatpush1.xpose.msra.mxu0 0.0
        %1371 = vmatprep.subr.mxu0 0.0
        %1372 = vmatpush1.xpose.msra.mxu0 0.0
        %1373 = vmatprep.subr.mxu0 0.0
        %1374 = vmatpush1.xpose.msra.mxu0 0.0
        %1375 = vmatprep.subr.mxu0 0.0
        %1376 = vmatpush1.xpose.msra.mxu0 0.0
        %1377 = vmatprep.subr.mxu0 0.0
        %1378 = vmatpush1.xpose.msra.mxu0 0.0
        %1379 = vmatprep.subr.mxu0 0.0
        %1380 = vmatpush1.xpose.msra.mxu0 0.0
        %1381 = vmatprep.subr.mxu0 0.0
        %1382 = vmatpush1.xpose.msra.mxu0 0.0
        %1383 = vmatprep.subr.mxu0 0.0
        %1384 = vmatpush1.xpose.msra.mxu0 0.0
        %1385 = vmatprep.subr.mxu0 0.0
        %1386 = vmatpush1.xpose.msra.mxu0 0.0
        %1387 = vmatprep.subr.mxu0 0.0
        %1388 = vmatpush1.xpose.msra.mxu0 0.0
        %1389 = vmatprep.subr.mxu0 0.0
        %1390 = vmatpush1.xpose.msra.mxu0 0.0
        %1391 = vmatprep.subr.mxu0 0.0
        %1392 = vmatpush1.xpose.msra.mxu0 0.0
        %1393 = vmatprep.subr.mxu0 0.0
        %1394 = vmatpush1.xpose.msra.mxu0 0.0
        %1395 = vmatprep.subr.mxu0 0.0
        %1396 = vmatpush1.xpose.msra.mxu0 0.0
        %1397 = vmatprep.subr.mxu0 0.0
        %1398 = vmatpush1.xpose.msra.mxu0 %v1365
        %1399 = vmatprep.subr.mxu0 0.0
        %1400 = vmatpush2.xpose.msra.mxu0 0.0
        %1401 = vmatprep.subr.mxu0 0.0
        %1402 = vmatpush2.xpose.msra.mxu0 0.0
        %1403 = vmatprep.subr.mxu0 0.0
        %1404 = vmatpush2.xpose.msra.mxu0 0.0
        %1405 = vmatprep.subr.mxu0 0.0
        %1406 = vmatpush2.xpose.msra.mxu0 0.0
        %1407 = vmatprep.subr.mxu0 0.0
        %1408 = vmatpush2.xpose.msra.mxu0 0.0
        %1409 = vmatprep.subr.mxu0 0.0
        %1410 = vmatpush2.xpose.msra.mxu0 0.0
        %1411 = vmatprep.subr.mxu0 0.0
        %1412 = vmatpush2.xpose.msra.mxu0 0.0
        %1413 = vmatprep.subr.mxu0 0.0
        %1414 = vmatpush2.xpose.msra.mxu0 0.0
        %1415 = vmatprep.subr.mxu0 0.0
        %1416 = vmatpush2.xpose.msra.mxu0 0.0
        %1417 = vmatprep.subr.mxu0 0.0
        %1418 = vmatpush2.xpose.msra.mxu0 0.0
        %1419 = vmatprep.subr.mxu0 0.0
        %1420 = vmatpush2.xpose.msra.mxu0 0.0
        %1421 = vmatprep.subr.mxu0 0.0
        %1422 = vmatpush2.xpose.msra.mxu0 0.0
        %1423 = vmatprep.subr.mxu0 0.0
        %1424 = vmatpush2.xpose.msra.mxu0 0.0
        %1425 = vmatprep.subr.mxu0 0.0
        %1426 = vmatpush2.xpose.msra.mxu0 0.0
        %1427 = vmatprep.subr.mxu0 0.0
        %1428 = vmatpush2.xpose.msra.mxu0 0.0
        %1429 = vmatprep.subr.mxu0 0.0
        %1430 = vmatpush2.xpose.msra.mxu0 0.0
        %1431 = vmatprep.mubr.f32.mxu0 0.0
        %1432 = vmatmul.mubr.f32.gmra.mxu0 %v1363
        %v1433 = vpop.f32.mrf.mxu0
        %v1434 = vadd.f32 0.0, %v1433
        %v1435 = vpop.f32.mrf.mxu0
        %1436 = vdwg.mxu0
        %v1437 = vsel %vm231, %v1434, -inf
        %1438 = vmax.xlane.f32.xlu0 %v1437
        %v1439 = vpop.xlane.xlu0 %1438
        %v1440 = vsub.f32 %v1434, %v1439
        %v1441 = vmul.f32 %v1440, 1.442695
        %v1442 = vpow.pop %v1441
        %v1443 = vsel %vm231, %v1442, 0.0
        %1444 = vadd.xlane.f32.xlu0 %v1443
        %v1445 = vpop.xlane.xlu0 %1444
        %v1446 = vrcp.pop %v1445
        %v1447 = vmul.f32 %v1442, %v1446
        %s1448 = scalar_lea.vmem %s141, 56 [#allocation2]
        %1449 = vst.msk [vmem:[%s1448] sm:$0xff] %vm231, %v1447
        %1450 = vrot.lane.b32.xlu0 %v150, 36
        %v1451 = vpop.permute.xlu0 %1450
        %v1454 = vsel %vm231, %v1447, 0
        %1456 = vmatprep.subr.mxu0 0.0
        %1457 = vmatpush1.msra.mxu0 0.0
        %1458 = vmatprep.subr.mxu0 0.0
        %1459 = vmatpush1.msra.mxu0 0.0
        %1460 = vmatprep.subr.mxu0 0.0
        %1461 = vmatpush1.msra.mxu0 0.0
        %1462 = vmatprep.subr.mxu0 0.0
        %1463 = vmatpush1.msra.mxu0 0.0
        %1464 = vmatprep.subr.mxu0 0.0
        %1465 = vmatpush1.msra.mxu0 0.0
        %1466 = vmatprep.subr.mxu0 0.0
        %1467 = vmatpush1.msra.mxu0 0.0
        %1468 = vmatprep.subr.mxu0 0.0
        %1469 = vmatpush1.msra.mxu0 0.0
        %1470 = vmatprep.subr.mxu0 0.0
        %1471 = vmatpush1.msra.mxu0 0.0
        %1472 = vmatprep.subr.mxu0 0.0
        %1473 = vmatpush1.msra.mxu0 0.0
        %1474 = vmatprep.subr.mxu0 0.0
        %1475 = vmatpush1.msra.mxu0 0.0
        %1476 = vmatprep.subr.mxu0 0.0
        %1477 = vmatpush1.msra.mxu0 0.0
        %1478 = vmatprep.subr.mxu0 0.0
        %1479 = vmatpush1.msra.mxu0 0.0
        %1480 = vmatprep.subr.mxu0 0.0
        %1481 = vmatpush1.msra.mxu0 0.0
        %1482 = vmatprep.subr.mxu0 0.0
        %1483 = vmatpush1.msra.mxu0 0.0
        %1484 = vmatprep.subr.mxu0 0.0
        %1485 = vmatpush1.msra.mxu0 0.0
        %1486 = vmatprep.subr.mxu0 0.0
        %1487 = vmatpush1.msra.mxu0 %v1451
        %1488 = vmatprep.subr.mxu0 0.0
        %1489 = vmatpush2.msra.mxu0 0.0
        %1490 = vmatprep.subr.mxu0 0.0
        %1491 = vmatpush2.msra.mxu0 0.0
        %1492 = vmatprep.subr.mxu0 0.0
        %1493 = vmatpush2.msra.mxu0 0.0
        %1494 = vmatprep.subr.mxu0 0.0
        %1495 = vmatpush2.msra.mxu0 0.0
        %1496 = vmatprep.subr.mxu0 0.0
        %1497 = vmatpush2.msra.mxu0 0.0
        %1498 = vmatprep.subr.mxu0 0.0
        %1499 = vmatpush2.msra.mxu0 0.0
        %1500 = vmatprep.subr.mxu0 0.0
        %1501 = vmatpush2.msra.mxu0 0.0
        %1502 = vmatprep.subr.mxu0 0.0
        %1503 = vmatpush2.msra.mxu0 0.0
        %1504 = vmatprep.subr.mxu0 0.0
        %1505 = vmatpush2.msra.mxu0 0.0
        %1506 = vmatprep.subr.mxu0 0.0
        %1507 = vmatpush2.msra.mxu0 0.0
        %1508 = vmatprep.subr.mxu0 0.0
        %1509 = vmatpush2.msra.mxu0 0.0
        %1510 = vmatprep.subr.mxu0 0.0
        %1511 = vmatpush2.msra.mxu0 0.0
        %1512 = vmatprep.subr.mxu0 0.0
        %1513 = vmatpush2.msra.mxu0 0.0
        %1514 = vmatprep.subr.mxu0 0.0
        %1515 = vmatpush2.msra.mxu0 0.0
        %1516 = vmatprep.subr.mxu0 0.0
        %1517 = vmatpush2.msra.mxu0 0.0
        %1518 = vmatprep.subr.mxu0 0.0
        %1519 = vmatpush2.msra.mxu0 0.0
        %1520 = vmatprep.mubr.f32.mxu0 0.0
        %1521 = vmatmul.mubr.f32.gmra.mxu0 %v1454
        %v1522 = vpop.f32.mrf.mxu0
        %v1523 = vadd.f32 0.0, %v1522
        %v1524 = vpop.f32.mrf.mxu0
        %1525 = vdwg.mxu0
        %1527 = vrot.lane.b32.xlu0 %v1523, 28
        %v1528 = vpop.permute.xlu0 %1527
        %vm1530 = vcmask 261344
        %1531 = vst.msk [vmem:[%s149] sm:$0xff] %vm1530, %v1528
        %p1532 = scmp.lt.s32.totalorder %s17, 1
        %s1533 = scalar_select %p1532, %s17, 1
        %s1534 = smul.addr %s1533, 8
        %s1535 = scalar_lea.vmem %s1, %s1534
        %s1536 = sand.u32 %s77, 1
        %s1537 = scalar_lea.sflag [#allocation3], %s1536
        %s1538 = sand.u32 %s77, 1
        %s1539 = smul.addr %s1538, 64
        %s1540 = scalar_lea.vmem [#allocation2], %s1539
        // Predicated region
        $region25: #{attention_forward.4} parent=23 // pred_check
          %p1541 = pneg %p61
        $region26: #{attention_forward.4} parent=23 // pred_check_branch
          %1543 = sbr.rel (%p1541) target = $region28
        $region27: #{attention_forward.4} parent=23 // pred_region
          _
        $region28: #{attention_forward.4} parent=23 // pred_fallthru
          _
        // Predicated region
        $region29: #{attention_forward.4} parent=23 // pred_check
          %p1544 = pneg %p87
        $region30: #{attention_forward.4} parent=23 // pred_check_branch
          %1546 = sbr.rel (%p1544) target = $region32
        $region31: #{attention_forward.4} parent=23 // pred_region
          %s1548 = ssub.s32 1024, 1024
          %1549 = vsyncadd %s1537, %s1548
          %s1550 = smul.addr %s17, 8
          %s1551 = smul.addr %s1550, 128
          %s1552 = scalar_lea.hbm %s2, %s1551
          %s1553 = sshll.u32 %s1540, 4
          %s1554 = int_to_ptr.vmem [resolvable:$true] %s1553
          %1559 = dma.vmem_to_hbm [thread:$0]  %s1554, 1024, %s1552, %s1537, 128, 128, 8
        $region32: #{attention_forward.4} parent=23 // pred_fallthru
          _
      $region24: #{attention_forward.4} parent=5 // pred_fallthru
        _
      %p1560 = scmp.le.s32.totalorder 2, %s12
      // Predicated region
      $region33: #{attention_forward.4} parent=5 // pred_check
        %p1561 = pneg %p1560
      $region34: #{attention_forward.4} parent=5 // pred_check_branch
        %1563 = sbr.rel (%p1561) target = $region36
      $region35: #{attention_forward.4} parent=5 // pred_region
        %s1564 = ssub.s32 %s12, 2
        // Predicated region
        $region37: #{attention_forward.4} parent=35 // pred_check
          %p1565 = pneg %p67
        $region38: #{attention_forward.4} parent=35 // pred_check_branch
          %1567 = sbr.rel (%p1565) target = $region40
        $region39: #{attention_forward.4} parent=35 // pred_region
          %p1568 = scmp.lt.s32.totalorder %s18, 1
          %s1569 = scalar_select %p1568, %s18, 1
          %s1570 = smul.addr %s1569, 8
          %s1571 = scalar_lea.vmem %s1, %s1570
        $region40: #{attention_forward.4} parent=35 // pred_fallthru
          _
        // Predicated region
        $region41: #{attention_forward.4} parent=35 // pred_check
          %p1572 = pneg %p93
        $region42: #{attention_forward.4} parent=35 // pred_check_branch
          %1574 = sbr.rel (%p1572) target = $region44
        $region43: #{attention_forward.4} parent=35 // pred_region
          %s1575 = sand.u32 %s78, 1
          %s1576 = scalar_lea.sflag [#allocation3], %s1575
          %s1577 = sand.u32 %s78, 1
          %s1578 = smul.addr %s1577, 64
          %s1579 = scalar_lea.vmem [#allocation2], %s1578
          %1580 = dma.done %s1576, 1024
        $region44: #{attention_forward.4} parent=35 // pred_fallthru
          _
      $region36: #{attention_forward.4} parent=5 // pred_fallthru
        _
    $region6: #{attention_forward.4} parent=1 // loop_footer
      %s16 = sadd.s32 1, %s12
    $region7: #{attention_forward.4} parent=1 // loop_footer_branch
      %11 = sbr.rel target = $region3
    $region8: #{attention_forward.4} parent=1 // loop_exit
      _
    %1581 = vsyncpa [#allocation3], 1
    %s1582 = scalar_lea.sflag [#allocation3], 1
    %1583 = vsyncpa %s1582, 1

</llo_original>
